<compile_context>
chip_gen: v7x
topology: tpu7x:2x2x1
jax: 0.10.0
libtpu: 0.0.40
codegen_flags: <defaults>
</compile_context>

<pallas_src>
import jax
import jax.numpy as jnp
from jax.experimental import pallas as pl
from jax.experimental.pallas import tpu as pltpu


def options_model_kernel(x_ref,                       # (1, S*Bt, I)  bf16, time-major flattened
                         wih0_ref, whh0_ref, b0_ref,  # (I,4H) bf16, (H,4H) bf16, (1,4H) f32
                         wih1_ref, whh1_ref, b1_ref,  # (H,4H) bf16, (H,4H) bf16, (1,4H) f32
                         attn_w_ref, attn_b_ref,      # (1,H) f32, (1,1) f32
                         fc1_w_ref, fc1_b_ref,        # (H,32) bf16, (1,32) f32
                         fc2_w_ref, fc2_b_ref,        # (32,Op) bf16, (1,Op) f32  (Op = 128-padded)
                         out_ref):                    # (1, Bt, Op) f32, lane-dense
    SB = x_ref.shape[1]
    Bt = out_ref.shape[1]
    S = SB // Bt
    H = whh0_ref.shape[0]
    f32 = jnp.float32
    bf16 = jnp.bfloat16

    def lstm_step(gates, c):
        # Gate columns are pre-ordered [i, f, o, g] by the wrapper:
        # sigmoid(x) = 0.5*(tanh(x/2)+1) on the contiguous i/f/o block,
        # tanh only on the H-wide cell gate (no full 4H-wide tanh).
        ifo = 0.5 * (jnp.tanh(0.5 * gates[:, :3 * H]) + 1.0)
        g_g = jnp.tanh(gates[:, 3 * H:])
        c_new = ifo[:, H:2 * H] * c + ifo[:, :H] * g_g
        h_new = ifo[:, 2 * H:] * jnp.tanh(c_new)
        return h_new, c_new

    # ---- layer 0: hoisted input projection (one bf16 MXU matmul) -------------
    xproj0 = (jnp.dot(x_ref[0], wih0_ref[...], preferred_element_type=f32)
              + b0_ref[...])                                   # (S*Bt, 4H) f32
    whh0 = whh0_ref[...]
    h_bf = jnp.zeros((Bt, H), bf16)
    c = jnp.zeros((Bt, H), f32)
    hs0 = []
    for t in range(S):                                         # static trip count -> unrolled
        gates = (xproj0[t * Bt:(t + 1) * Bt, :]
                 + jnp.dot(h_bf, whh0, preferred_element_type=f32))
        h, c = lstm_step(gates, c)
        h_bf = h.astype(bf16)
        hs0.append(h_bf)                                       # stays in registers
    # TODO(synk): nn.LSTM inter-layer dropout (p=0.2) is training-only; eval forward is identity.

    # ---- layer 1: hoisted input projection over the stacked layer-0 states ---
    seq0 = jnp.concatenate(hs0, axis=0)                        # (S*Bt, H) bf16, no VMEM scratch
    xproj1 = (jnp.dot(seq0, wih1_ref[...], preferred_element_type=f32)
              + b1_ref[...])                                   # (S*Bt, 4H) f32

    # ---- layer 1 recurrence with fused online-softmax attention --------------
    whh1 = whh1_ref[...]
    attn_w = attn_w_ref[...]                                   # (1, H)
    attn_b = attn_b_ref[...]                                   # (1, 1)
    h_bf = jnp.zeros((Bt, H), bf16)
    c = jnp.zeros((Bt, H), f32)
    m = None
    for t in range(S):
        gates = (xproj1[t * Bt:(t + 1) * Bt, :]
                 + jnp.dot(h_bf, whh1, preferred_element_type=f32))
        h, c = lstm_step(gates, c)
        h_bf = h.astype(bf16)
        s = jnp.sum(h * attn_w, axis=-1, keepdims=True) + attn_b   # (Bt, 1) f32
        if m is None:                                          # first step
            m, denom, acc = s, jnp.ones_like(s), h
        else:                                                  # online softmax update
            m_new = jnp.maximum(m, s)
            alpha = jnp.exp(m - m_new)
            p = jnp.exp(s - m_new)
            denom = alpha * denom + p
            acc = alpha * acc + p * h
            m = m_new
    weighted = acc * pl.reciprocal(denom, approx=True)         # (Bt, H) f32

    # ---- MLP head (nn.Dropout(0.2) is identity in eval mode) -----------------
    h1 = jnp.maximum(
        jnp.dot(weighted.astype(bf16), fc1_w_ref[...], preferred_element_type=f32)
        + fc1_b_ref[...], 0.0)                                 # (Bt, 32) f32
    out_ref[0] = (jnp.dot(h1.astype(bf16), fc2_w_ref[...], preferred_element_type=f32)
                  + fc2_b_ref[...])                            # (Bt, Op) lane-dense store


def _reorder_gates(w, axis):
    """PyTorch LSTM gate order [i, f, g, o] -> kernel order [i, f, o, g]."""
    i, f, g, o = jnp.split(w, 4, axis=axis)
    return jnp.concatenate([i, f, o, g], axis=axis)


def options_model_forward(x, params, batch_tile=None):
    """x: (B, S, I) batch_first, matching the PyTorch module (eval mode)."""
    B, S, I = x.shape
    H = params['w_hh_l0'].shape[1]
    O = params['fc2_w'].shape[0]
    O_pad = ((O + 127) // 128) * 128                   # lane-dense output columns

    SUB = 8                                            # sublane count
    B_pad = ((B + SUB - 1) // SUB) * SUB               # pad batch to a sublane multiple
    if batch_tile is None:
        # bt is a multiple of 8; prefer >=2 grid steps when the batch allows so the
        # "parallel" axis can shard across v7x's two TensorCores.
        bt = SUB if B_pad <= SUB else max(SUB, (B_pad // 2) // SUB * SUB)
        while B_pad % bt:
            bt -= SUB
    else:
        bt = batch_tile
        assert bt % SUB == 0 and B_pad % bt == 0, "batch_tile must be a multiple of 8 dividing padded B"
    nb = B_pad // bt

    if B_pad != B:
        x = jnp.concatenate([x, jnp.zeros((B_pad - B, S, I), x.dtype)], axis=0)

    # Time-major, batch-tiled, flattened to (nb, S*bt, I); row r of a tile is
    # (t = r // bt, local batch = r % bt) so layer-0's projection is one matmul.
    x_tiles = (x.astype(jnp.bfloat16)
                 .transpose(1, 0, 2)                   # (S, B_pad, I)
                 .reshape(S, nb, bt, I)
                 .transpose(1, 0, 2, 3)
                 .reshape(nb, S * bt, I))

    bf16 = jnp.bfloat16
    wih0 = _reorder_gates(params['w_ih_l0'], 0).T.astype(bf16)          # (I, 4H)
    whh0 = _reorder_gates(params['w_hh_l0'], 0).T.astype(bf16)          # (H, 4H)
    b0 = _reorder_gates(params['b_ih_l0'] + params['b_hh_l0'], 0).reshape(1, 4 * H)
    wih1 = _reorder_gates(params['w_ih_l1'], 0).T.astype(bf16)          # (H, 4H)
    whh1 = _reorder_gates(params['w_hh_l1'], 0).T.astype(bf16)          # (H, 4H)
    b1 = _reorder_gates(params['b_ih_l1'] + params['b_hh_l1'], 0).reshape(1, 4 * H)
    attn_w = params['attn_w'].reshape(1, H)
    attn_b = params['attn_b'].reshape(1, 1)
    fc1_w = params['fc1_w'].T.astype(bf16)                              # (H, 32)
    fc1_b = params['fc1_b'].reshape(1, -1)
    fc2_w = jnp.zeros((32, O_pad), jnp.float32).at[:, :O].set(params['fc2_w'].T).astype(bf16)
    fc2_b = jnp.zeros((1, O_pad), jnp.float32).at[0, :O].set(params['fc2_b'])

    weights = (wih0, whh0, b0, wih1, whh1, b1,
               attn_w, attn_b, fc1_w, fc1_b, fc2_w, fc2_b)

    def full_spec(a):
        nd = a.ndim
        return pl.BlockSpec(a.shape, lambda b, _nd=nd: (0,) * _nd)

    out = pl.pallas_call(
        options_model_kernel,
        out_shape=jax.ShapeDtypeStruct((nb, bt, O_pad), jnp.float32),
        grid=(nb,),
        in_specs=[pl.BlockSpec((1, S * bt, I), lambda b: (b, 0, 0))]
                 + [full_spec(w) for w in weights],
        out_specs=pl.BlockSpec((1, bt, O_pad), lambda b: (b, 0, 0)),
        compiler_params=pltpu.CompilerParams(dimension_semantics=("parallel",)),
    )(x_tiles, *weights)

    return out.reshape(B_pad, O_pad)[:B, :O]


def ref_forward(x, params):
    """Pure-JAX f32 reference mirroring the PyTorch forward (eval mode)."""
    B, S, _ = x.shape
    H = params['w_hh_l0'].shape[1]

    def lstm_layer(inp, wih, whh, bih, bhh):
        h = jnp.zeros((B, H), jnp.float32)
        c = jnp.zeros((B, H), jnp.float32)
        outs = []
        for t in range(S):
            g = inp[:, t, :] @ wih.T + h @ whh.T + bih + bhh
            i = jax.nn.sigmoid(g[:, :H])
            f = jax.nn.sigmoid(g[:, H:2 * H])
            gg = jnp.tanh(g[:, 2 * H:3 * H])
            o = jax.nn.sigmoid(g[:, 3 * H:])
            c = f * c + i * gg
            h = o * jnp.tanh(c)
            outs.append(h)
        return jnp.stack(outs, axis=1)

    out = lstm_layer(x, params['w_ih_l0'], params['w_hh_l0'],
                     params['b_ih_l0'], params['b_hh_l0'])
    out = lstm_layer(out, params['w_ih_l1'], params['w_hh_l1'],
                     params['b_ih_l1'], params['b_hh_l1'])
    scores = out @ params['attn_w'].T + params['attn_b']      # (B, S, 1)
    w = jax.nn.softmax(scores, axis=1)
    weighted = jnp.sum(w * out, axis=1)                       # (B, H)
    h1 = jnp.maximum(weighted @ params['fc1_w'].T + params['fc1_b'], 0.0)
    return h1 @ params['fc2_w'].T + params['fc2_b']


def init_params(key, input_size, hidden_size, output_size):
    H, I, O = hidden_size, input_size, output_size
    shapes = {
        'w_ih_l0': (4 * H, I), 'w_hh_l0': (4 * H, H),
        'b_ih_l0': (4 * H,), 'b_hh_l0': (4 * H,),
        'w_ih_l1': (4 * H, H), 'w_hh_l1': (4 * H, H),
        'b_ih_l1': (4 * H,), 'b_hh_l1': (4 * H,),
        'attn_w': (1, H), 'attn_b': (1,),
        'fc1_w': (32, H), 'fc1_b': (32,),
        'fc2_w': (O, 32), 'fc2_b': (O,),
    }
    params = {}
    for name, shape in sorted(shapes.items()):
        key, sub = jax.random.split(key)
        params[name] = jax.random.uniform(sub, shape, jnp.float32, -0.1, 0.1)
    return params


if __name__ == "__main__":
    B, S, I, H, O = 2, 8, 8, 32, 4
    key = jax.random.PRNGKey(0)
    key, kx = jax.random.split(key)
    x = jax.random.normal(kx, (B, S, I), jnp.float32)
    params = init_params(key, I, H, O)

    out = jax.block_until_ready(options_model_forward(x, params))
    ref = jax.block_until_ready(ref_forward(x, params))

    assert out.shape == (B, O), out.shape
    # bf16 MXU operands -> slightly looser tolerance than the pure-f32 version.
    assert jnp.allclose(out, ref, atol=3e-3, rtol=3e-3), (out, ref)
    print("KERNEL_OK")
</pallas_src>

<mosaic_0001>
module attributes {stable_mosaic.version = 11 : i64} {
  func.func @options_model_kernel(%arg0: i32, %arg1: memref<1x64x8xbf16, #tpu.memory_space<vmem>>, %arg2: memref<8x128xbf16, #tpu.memory_space<vmem>>, %arg3: memref<32x128xbf16, #tpu.memory_space<vmem>>, %arg4: memref<1x128xf32, #tpu.memory_space<vmem>>, %arg5: memref<32x128xbf16, #tpu.memory_space<vmem>>, %arg6: memref<32x128xbf16, #tpu.memory_space<vmem>>, %arg7: memref<1x128xf32, #tpu.memory_space<vmem>>, %arg8: memref<1x32xf32, #tpu.memory_space<vmem>>, %arg9: memref<1x1xf32, #tpu.memory_space<vmem>>, %arg10: memref<32x32xbf16, #tpu.memory_space<vmem>>, %arg11: memref<1x32xf32, #tpu.memory_space<vmem>>, %arg12: memref<32x128xbf16, #tpu.memory_space<vmem>>, %arg13: memref<1x128xf32, #tpu.memory_space<vmem>>, %arg14: memref<1x8x128xf32, #tpu.memory_space<vmem>>) attributes {dimension_semantics = [#tpu.dimension_semantics<parallel>], iteration_bounds = array<i64: 1>, scalar_prefetch = 0 : i64, scratch_operands = 0 : i64, tpu.core_type = #tpu.core_type<tc>, window_params = [{transform_indices = @transform_0, window_bounds = array<i64: 1, 64, 8>}, {pipeline_mode = #tpu.pipeline_mode<synchronous>, transform_indices = @transform_1, window_bounds = array<i64: 8, 128>}, {pipeline_mode = #tpu.pipeline_mode<synchronous>, transform_indices = @transform_2, window_bounds = array<i64: 32, 128>}, {pipeline_mode = #tpu.pipeline_mode<synchronous>, transform_indices = @transform_3, window_bounds = array<i64: 1, 128>}, {pipeline_mode = #tpu.pipeline_mode<synchronous>, transform_indices = @transform_4, window_bounds = array<i64: 32, 128>}, {pipeline_mode = #tpu.pipeline_mode<synchronous>, transform_indices = @transform_5, window_bounds = array<i64: 32, 128>}, {pipeline_mode = #tpu.pipeline_mode<synchronous>, transform_indices = @transform_6, window_bounds = array<i64: 1, 128>}, {pipeline_mode = #tpu.pipeline_mode<synchronous>, transform_indices = @transform_7, window_bounds = array<i64: 1, 32>}, {pipeline_mode = #tpu.pipeline_mode<synchronous>, transform_indices = @transform_8, window_bounds = array<i64: 1, 1>}, {pipeline_mode = #tpu.pipeline_mode<synchronous>, transform_indices = @transform_9, window_bounds = array<i64: 32, 32>}, {pipeline_mode = #tpu.pipeline_mode<synchronous>, transform_indices = @transform_10, window_bounds = array<i64: 1, 32>}, {pipeline_mode = #tpu.pipeline_mode<synchronous>, transform_indices = @transform_11, window_bounds = array<i64: 32, 128>}, {pipeline_mode = #tpu.pipeline_mode<synchronous>, transform_indices = @transform_12, window_bounds = array<i64: 1, 128>}, {transform_indices = @transform_13, window_bounds = array<i64: 1, 8, 128>}]} {
    %c0 = arith.constant 0 : index
    %c0_0 = arith.constant 0 : index
    %c0_1 = arith.constant 0 : index
    %0 = vector.load %arg1[%c0, %c0_0, %c0_1] : memref<1x64x8xbf16, #tpu.memory_space<vmem>>, vector<1x64x8xbf16>
    %1 = vector.shape_cast %0 : vector<1x64x8xbf16> to vector<64x8xbf16>
    %c0_2 = arith.constant 0 : index
    %c0_3 = arith.constant 0 : index
    %2 = vector.load %arg2[%c0_2, %c0_3] : memref<8x128xbf16, #tpu.memory_space<vmem>>, vector<8x128xbf16>
    %cst = arith.constant dense<0.000000e+00> : vector<64x128xf32>
    %3 = tpu.matmul %1, %2, %cst {dimension_numbers = #tpu.dot_dimension_numbers<[1], [0], [0], [1], [0, 0, 1, 1], [], []>} : vector<64x8xbf16>, vector<8x128xbf16>, vector<64x128xf32> -> vector<64x128xf32>
    %c0_4 = arith.constant 0 : index
    %c0_5 = arith.constant 0 : index
    %4 = vector.load %arg4[%c0_4, %c0_5] : memref<1x128xf32, #tpu.memory_space<vmem>>, vector<1x128xf32>
    %5 = vector.broadcast %4 : vector<1x128xf32> to vector<64x128xf32>
    %6 = arith.addf %3, %5 : vector<64x128xf32>
    %c0_6 = arith.constant 0 : index
    %c0_7 = arith.constant 0 : index
    %7 = vector.load %arg3[%c0_6, %c0_7] : memref<32x128xbf16, #tpu.memory_space<vmem>>, vector<32x128xbf16>
    %cst_8 = arith.constant 0.000000e+00 : bf16
    %8 = vector.broadcast %cst_8 : bf16 to vector<8x32xbf16>
    %cst_9 = arith.constant 0.000000e+00 : f32
    %9 = vector.broadcast %cst_9 : f32 to vector<8x32xf32>
    %10 = vector.extract_strided_slice %6 {offsets = [0, 0], sizes = [8, 128], strides = [1, 1]} : vector<64x128xf32> to vector<8x128xf32>
    %cst_10 = arith.constant dense<0.000000e+00> : vector<8x128xf32>
    %11 = tpu.matmul %8, %7, %cst_10 {dimension_numbers = #tpu.dot_dimension_numbers<[1], [0], [0], [1], [0, 0, 1, 1], [], []>} : vector<8x32xbf16>, vector<32x128xbf16>, vector<8x128xf32> -> vector<8x128xf32>
    %12 = arith.addf %10, %11 : vector<8x128xf32>
    %13 = vector.extract_strided_slice %12 {offsets = [0, 0], sizes = [8, 96], strides = [1, 1]} : vector<8x128xf32> to vector<8x96xf32>
    %cst_11 = arith.constant 5.000000e-01 : f32
    %14 = vector.broadcast %cst_11 : f32 to vector<8x96xf32>
    %15 = arith.mulf %14, %13 : vector<8x96xf32>
    %16 = math.tanh %15 : vector<8x96xf32>
    %cst_12 = arith.constant 1.000000e+00 : f32
    %17 = vector.broadcast %cst_12 : f32 to vector<8x96xf32>
    %18 = arith.addf %16, %17 : vector<8x96xf32>
    %cst_13 = arith.constant 5.000000e-01 : f32
    %19 = vector.broadcast %cst_13 : f32 to vector<8x96xf32>
    %20 = arith.mulf %19, %18 : vector<8x96xf32>
    %21 = vector.extract_strided_slice %12 {offsets = [0, 96], sizes = [8, 32], strides = [1, 1]} : vector<8x128xf32> to vector<8x32xf32>
    %22 = math.tanh %21 : vector<8x32xf32>
    %23 = vector.extract_strided_slice %20 {offsets = [0, 32], sizes = [8, 32], strides = [1, 1]} : vector<8x96xf32> to vector<8x32xf32>
    %24 = arith.mulf %23, %9 : vector<8x32xf32>
    %25 = vector.extract_strided_slice %20 {offsets = [0, 0], sizes = [8, 32], strides = [1, 1]} : vector<8x96xf32> to vector<8x32xf32>
    %26 = arith.mulf %25, %22 : vector<8x32xf32>
    %27 = arith.addf %24, %26 : vector<8x32xf32>
    %28 = vector.extract_strided_slice %20 {offsets = [0, 64], sizes = [8, 32], strides = [1, 1]} : vector<8x96xf32> to vector<8x32xf32>
    %29 = math.tanh %27 : vector<8x32xf32>
    %30 = arith.mulf %28, %29 : vector<8x32xf32>
    %31 = arith.truncf %30 : vector<8x32xf32> to vector<8x32xbf16>
    %32 = vector.extract_strided_slice %6 {offsets = [8, 0], sizes = [8, 128], strides = [1, 1]} : vector<64x128xf32> to vector<8x128xf32>
    %cst_14 = arith.constant dense<0.000000e+00> : vector<8x128xf32>
    %33 = tpu.matmul %31, %7, %cst_14 {dimension_numbers = #tpu.dot_dimension_numbers<[1], [0], [0], [1], [0, 0, 1, 1], [], []>} : vector<8x32xbf16>, vector<32x128xbf16>, vector<8x128xf32> -> vector<8x128xf32>
    %34 = arith.addf %32, %33 : vector<8x128xf32>
    %35 = vector.extract_strided_slice %34 {offsets = [0, 0], sizes = [8, 96], strides = [1, 1]} : vector<8x128xf32> to vector<8x96xf32>
    %cst_15 = arith.constant 5.000000e-01 : f32
    %36 = vector.broadcast %cst_15 : f32 to vector<8x96xf32>
    %37 = arith.mulf %36, %35 : vector<8x96xf32>
    %38 = math.tanh %37 : vector<8x96xf32>
    %cst_16 = arith.constant 1.000000e+00 : f32
    %39 = vector.broadcast %cst_16 : f32 to vector<8x96xf32>
    %40 = arith.addf %38, %39 : vector<8x96xf32>
    %cst_17 = arith.constant 5.000000e-01 : f32
    %41 = vector.broadcast %cst_17 : f32 to vector<8x96xf32>
    %42 = arith.mulf %41, %40 : vector<8x96xf32>
    %43 = vector.extract_strided_slice %34 {offsets = [0, 96], sizes = [8, 32], strides = [1, 1]} : vector<8x128xf32> to vector<8x32xf32>
    %44 = math.tanh %43 : vector<8x32xf32>
    %45 = vector.extract_strided_slice %42 {offsets = [0, 32], sizes = [8, 32], strides = [1, 1]} : vector<8x96xf32> to vector<8x32xf32>
    %46 = arith.mulf %45, %27 : vector<8x32xf32>
    %47 = vector.extract_strided_slice %42 {offsets = [0, 0], sizes = [8, 32], strides = [1, 1]} : vector<8x96xf32> to vector<8x32xf32>
    %48 = arith.mulf %47, %44 : vector<8x32xf32>
    %49 = arith.addf %46, %48 : vector<8x32xf32>
    %50 = vector.extract_strided_slice %42 {offsets = [0, 64], sizes = [8, 32], strides = [1, 1]} : vector<8x96xf32> to vector<8x32xf32>
    %51 = math.tanh %49 : vector<8x32xf32>
    %52 = arith.mulf %50, %51 : vector<8x32xf32>
    %53 = arith.truncf %52 : vector<8x32xf32> to vector<8x32xbf16>
    %54 = vector.extract_strided_slice %6 {offsets = [16, 0], sizes = [8, 128], strides = [1, 1]} : vector<64x128xf32> to vector<8x128xf32>
    %cst_18 = arith.constant dense<0.000000e+00> : vector<8x128xf32>
    %55 = tpu.matmul %53, %7, %cst_18 {dimension_numbers = #tpu.dot_dimension_numbers<[1], [0], [0], [1], [0, 0, 1, 1], [], []>} : vector<8x32xbf16>, vector<32x128xbf16>, vector<8x128xf32> -> vector<8x128xf32>
    %56 = arith.addf %54, %55 : vector<8x128xf32>
    %57 = vector.extract_strided_slice %56 {offsets = [0, 0], sizes = [8, 96], strides = [1, 1]} : vector<8x128xf32> to vector<8x96xf32>
    %cst_19 = arith.constant 5.000000e-01 : f32
    %58 = vector.broadcast %cst_19 : f32 to vector<8x96xf32>
    %59 = arith.mulf %58, %57 : vector<8x96xf32>
    %60 = math.tanh %59 : vector<8x96xf32>
    %cst_20 = arith.constant 1.000000e+00 : f32
    %61 = vector.broadcast %cst_20 : f32 to vector<8x96xf32>
    %62 = arith.addf %60, %61 : vector<8x96xf32>
    %cst_21 = arith.constant 5.000000e-01 : f32
    %63 = vector.broadcast %cst_21 : f32 to vector<8x96xf32>
    %64 = arith.mulf %63, %62 : vector<8x96xf32>
    %65 = vector.extract_strided_slice %56 {offsets = [0, 96], sizes = [8, 32], strides = [1, 1]} : vector<8x128xf32> to vector<8x32xf32>
    %66 = math.tanh %65 : vector<8x32xf32>
    %67 = vector.extract_strided_slice %64 {offsets = [0, 32], sizes = [8, 32], strides = [1, 1]} : vector<8x96xf32> to vector<8x32xf32>
    %68 = arith.mulf %67, %49 : vector<8x32xf32>
    %69 = vector.extract_strided_slice %64 {offsets = [0, 0], sizes = [8, 32], strides = [1, 1]} : vector<8x96xf32> to vector<8x32xf32>
    %70 = arith.mulf %69, %66 : vector<8x32xf32>
    %71 = arith.addf %68, %70 : vector<8x32xf32>
    %72 = vector.extract_strided_slice %64 {offsets = [0, 64], sizes = [8, 32], strides = [1, 1]} : vector<8x96xf32> to vector<8x32xf32>
    %73 = math.tanh %71 : vector<8x32xf32>
    %74 = arith.mulf %72, %73 : vector<8x32xf32>
    %75 = arith.truncf %74 : vector<8x32xf32> to vector<8x32xbf16>
    %76 = vector.extract_strided_slice %6 {offsets = [24, 0], sizes = [8, 128], strides = [1, 1]} : vector<64x128xf32> to vector<8x128xf32>
    %cst_22 = arith.constant dense<0.000000e+00> : vector<8x128xf32>
    %77 = tpu.matmul %75, %7, %cst_22 {dimension_numbers = #tpu.dot_dimension_numbers<[1], [0], [0], [1], [0, 0, 1, 1], [], []>} : vector<8x32xbf16>, vector<32x128xbf16>, vector<8x128xf32> -> vector<8x128xf32>
    %78 = arith.addf %76, %77 : vector<8x128xf32>
    %79 = vector.extract_strided_slice %78 {offsets = [0, 0], sizes = [8, 96], strides = [1, 1]} : vector<8x128xf32> to vector<8x96xf32>
    %cst_23 = arith.constant 5.000000e-01 : f32
    %80 = vector.broadcast %cst_23 : f32 to vector<8x96xf32>
    %81 = arith.mulf %80, %79 : vector<8x96xf32>
    %82 = math.tanh %81 : vector<8x96xf32>
    %cst_24 = arith.constant 1.000000e+00 : f32
    %83 = vector.broadcast %cst_24 : f32 to vector<8x96xf32>
    %84 = arith.addf %82, %83 : vector<8x96xf32>
    %cst_25 = arith.constant 5.000000e-01 : f32
    %85 = vector.broadcast %cst_25 : f32 to vector<8x96xf32>
    %86 = arith.mulf %85, %84 : vector<8x96xf32>
    %87 = vector.extract_strided_slice %78 {offsets = [0, 96], sizes = [8, 32], strides = [1, 1]} : vector<8x128xf32> to vector<8x32xf32>
    %88 = math.tanh %87 : vector<8x32xf32>
    %89 = vector.extract_strided_slice %86 {offsets = [0, 32], sizes = [8, 32], strides = [1, 1]} : vector<8x96xf32> to vector<8x32xf32>
    %90 = arith.mulf %89, %71 : vector<8x32xf32>
    %91 = vector.extract_strided_slice %86 {offsets = [0, 0], sizes = [8, 32], strides = [1, 1]} : vector<8x96xf32> to vector<8x32xf32>
    %92 = arith.mulf %91, %88 : vector<8x32xf32>
    %93 = arith.addf %90, %92 : vector<8x32xf32>
    %94 = vector.extract_strided_slice %86 {offsets = [0, 64], sizes = [8, 32], strides = [1, 1]} : vector<8x96xf32> to vector<8x32xf32>
    %95 = math.tanh %93 : vector<8x32xf32>
    %96 = arith.mulf %94, %95 : vector<8x32xf32>
    %97 = arith.truncf %96 : vector<8x32xf32> to vector<8x32xbf16>
    %98 = vector.extract_strided_slice %6 {offsets = [32, 0], sizes = [8, 128], strides = [1, 1]} : vector<64x128xf32> to vector<8x128xf32>
    %cst_26 = arith.constant dense<0.000000e+00> : vector<8x128xf32>
    %99 = tpu.matmul %97, %7, %cst_26 {dimension_numbers = #tpu.dot_dimension_numbers<[1], [0], [0], [1], [0, 0, 1, 1], [], []>} : vector<8x32xbf16>, vector<32x128xbf16>, vector<8x128xf32> -> vector<8x128xf32>
    %100 = arith.addf %98, %99 : vector<8x128xf32>
    %101 = vector.extract_strided_slice %100 {offsets = [0, 0], sizes = [8, 96], strides = [1, 1]} : vector<8x128xf32> to vector<8x96xf32>
    %cst_27 = arith.constant 5.000000e-01 : f32
    %102 = vector.broadcast %cst_27 : f32 to vector<8x96xf32>
    %103 = arith.mulf %102, %101 : vector<8x96xf32>
    %104 = math.tanh %103 : vector<8x96xf32>
    %cst_28 = arith.constant 1.000000e+00 : f32
    %105 = vector.broadcast %cst_28 : f32 to vector<8x96xf32>
    %106 = arith.addf %104, %105 : vector<8x96xf32>
    %cst_29 = arith.constant 5.000000e-01 : f32
    %107 = vector.broadcast %cst_29 : f32 to vector<8x96xf32>
    %108 = arith.mulf %107, %106 : vector<8x96xf32>
    %109 = vector.extract_strided_slice %100 {offsets = [0, 96], sizes = [8, 32], strides = [1, 1]} : vector<8x128xf32> to vector<8x32xf32>
    %110 = math.tanh %109 : vector<8x32xf32>
    %111 = vector.extract_strided_slice %108 {offsets = [0, 32], sizes = [8, 32], strides = [1, 1]} : vector<8x96xf32> to vector<8x32xf32>
    %112 = arith.mulf %111, %93 : vector<8x32xf32>
    %113 = vector.extract_strided_slice %108 {offsets = [0, 0], sizes = [8, 32], strides = [1, 1]} : vector<8x96xf32> to vector<8x32xf32>
    %114 = arith.mulf %113, %110 : vector<8x32xf32>
    %115 = arith.addf %112, %114 : vector<8x32xf32>
    %116 = vector.extract_strided_slice %108 {offsets = [0, 64], sizes = [8, 32], strides = [1, 1]} : vector<8x96xf32> to vector<8x32xf32>
    %117 = math.tanh %115 : vector<8x32xf32>
    %118 = arith.mulf %116, %117 : vector<8x32xf32>
    %119 = arith.truncf %118 : vector<8x32xf32> to vector<8x32xbf16>
    %120 = vector.extract_strided_slice %6 {offsets = [40, 0], sizes = [8, 128], strides = [1, 1]} : vector<64x128xf32> to vector<8x128xf32>
    %cst_30 = arith.constant dense<0.000000e+00> : vector<8x128xf32>
    %121 = tpu.matmul %119, %7, %cst_30 {dimension_numbers = #tpu.dot_dimension_numbers<[1], [0], [0], [1], [0, 0, 1, 1], [], []>} : vector<8x32xbf16>, vector<32x128xbf16>, vector<8x128xf32> -> vector<8x128xf32>
    %122 = arith.addf %120, %121 : vector<8x128xf32>
    %123 = vector.extract_strided_slice %122 {offsets = [0, 0], sizes = [8, 96], strides = [1, 1]} : vector<8x128xf32> to vector<8x96xf32>
    %cst_31 = arith.constant 5.000000e-01 : f32
    %124 = vector.broadcast %cst_31 : f32 to vector<8x96xf32>
    %125 = arith.mulf %124, %123 : vector<8x96xf32>
    %126 = math.tanh %125 : vector<8x96xf32>
    %cst_32 = arith.constant 1.000000e+00 : f32
    %127 = vector.broadcast %cst_32 : f32 to vector<8x96xf32>
    %128 = arith.addf %126, %127 : vector<8x96xf32>
    %cst_33 = arith.constant 5.000000e-01 : f32
    %129 = vector.broadcast %cst_33 : f32 to vector<8x96xf32>
    %130 = arith.mulf %129, %128 : vector<8x96xf32>
    %131 = vector.extract_strided_slice %122 {offsets = [0, 96], sizes = [8, 32], strides = [1, 1]} : vector<8x128xf32> to vector<8x32xf32>
    %132 = math.tanh %131 : vector<8x32xf32>
    %133 = vector.extract_strided_slice %130 {offsets = [0, 32], sizes = [8, 32], strides = [1, 1]} : vector<8x96xf32> to vector<8x32xf32>
    %134 = arith.mulf %133, %115 : vector<8x32xf32>
    %135 = vector.extract_strided_slice %130 {offsets = [0, 0], sizes = [8, 32], strides = [1, 1]} : vector<8x96xf32> to vector<8x32xf32>
    %136 = arith.mulf %135, %132 : vector<8x32xf32>
    %137 = arith.addf %134, %136 : vector<8x32xf32>
    %138 = vector.extract_strided_slice %130 {offsets = [0, 64], sizes = [8, 32], strides = [1, 1]} : vector<8x96xf32> to vector<8x32xf32>
    %139 = math.tanh %137 : vector<8x32xf32>
    %140 = arith.mulf %138, %139 : vector<8x32xf32>
    %141 = arith.truncf %140 : vector<8x32xf32> to vector<8x32xbf16>
    %142 = vector.extract_strided_slice %6 {offsets = [48, 0], sizes = [8, 128], strides = [1, 1]} : vector<64x128xf32> to vector<8x128xf32>
    %cst_34 = arith.constant dense<0.000000e+00> : vector<8x128xf32>
    %143 = tpu.matmul %141, %7, %cst_34 {dimension_numbers = #tpu.dot_dimension_numbers<[1], [0], [0], [1], [0, 0, 1, 1], [], []>} : vector<8x32xbf16>, vector<32x128xbf16>, vector<8x128xf32> -> vector<8x128xf32>
    %144 = arith.addf %142, %143 : vector<8x128xf32>
    %145 = vector.extract_strided_slice %144 {offsets = [0, 0], sizes = [8, 96], strides = [1, 1]} : vector<8x128xf32> to vector<8x96xf32>
    %cst_35 = arith.constant 5.000000e-01 : f32
    %146 = vector.broadcast %cst_35 : f32 to vector<8x96xf32>
    %147 = arith.mulf %146, %145 : vector<8x96xf32>
    %148 = math.tanh %147 : vector<8x96xf32>
    %cst_36 = arith.constant 1.000000e+00 : f32
    %149 = vector.broadcast %cst_36 : f32 to vector<8x96xf32>
    %150 = arith.addf %148, %149 : vector<8x96xf32>
    %cst_37 = arith.constant 5.000000e-01 : f32
    %151 = vector.broadcast %cst_37 : f32 to vector<8x96xf32>
    %152 = arith.mulf %151, %150 : vector<8x96xf32>
    %153 = vector.extract_strided_slice %144 {offsets = [0, 96], sizes = [8, 32], strides = [1, 1]} : vector<8x128xf32> to vector<8x32xf32>
    %154 = math.tanh %153 : vector<8x32xf32>
    %155 = vector.extract_strided_slice %152 {offsets = [0, 32], sizes = [8, 32], strides = [1, 1]} : vector<8x96xf32> to vector<8x32xf32>
    %156 = arith.mulf %155, %137 : vector<8x32xf32>
    %157 = vector.extract_strided_slice %152 {offsets = [0, 0], sizes = [8, 32], strides = [1, 1]} : vector<8x96xf32> to vector<8x32xf32>
    %158 = arith.mulf %157, %154 : vector<8x32xf32>
    %159 = arith.addf %156, %158 : vector<8x32xf32>
    %160 = vector.extract_strided_slice %152 {offsets = [0, 64], sizes = [8, 32], strides = [1, 1]} : vector<8x96xf32> to vector<8x32xf32>
    %161 = math.tanh %159 : vector<8x32xf32>
    %162 = arith.mulf %160, %161 : vector<8x32xf32>
    %163 = arith.truncf %162 : vector<8x32xf32> to vector<8x32xbf16>
    %164 = vector.extract_strided_slice %6 {offsets = [56, 0], sizes = [8, 128], strides = [1, 1]} : vector<64x128xf32> to vector<8x128xf32>
    %cst_38 = arith.constant dense<0.000000e+00> : vector<8x128xf32>
    %165 = tpu.matmul %163, %7, %cst_38 {dimension_numbers = #tpu.dot_dimension_numbers<[1], [0], [0], [1], [0, 0, 1, 1], [], []>} : vector<8x32xbf16>, vector<32x128xbf16>, vector<8x128xf32> -> vector<8x128xf32>
    %166 = arith.addf %164, %165 : vector<8x128xf32>
    %167 = vector.extract_strided_slice %166 {offsets = [0, 0], sizes = [8, 96], strides = [1, 1]} : vector<8x128xf32> to vector<8x96xf32>
    %cst_39 = arith.constant 5.000000e-01 : f32
    %168 = vector.broadcast %cst_39 : f32 to vector<8x96xf32>
    %169 = arith.mulf %168, %167 : vector<8x96xf32>
    %170 = math.tanh %169 : vector<8x96xf32>
    %cst_40 = arith.constant 1.000000e+00 : f32
    %171 = vector.broadcast %cst_40 : f32 to vector<8x96xf32>
    %172 = arith.addf %170, %171 : vector<8x96xf32>
    %cst_41 = arith.constant 5.000000e-01 : f32
    %173 = vector.broadcast %cst_41 : f32 to vector<8x96xf32>
    %174 = arith.mulf %173, %172 : vector<8x96xf32>
    %175 = vector.extract_strided_slice %166 {offsets = [0, 96], sizes = [8, 32], strides = [1, 1]} : vector<8x128xf32> to vector<8x32xf32>
    %176 = math.tanh %175 : vector<8x32xf32>
    %177 = vector.extract_strided_slice %174 {offsets = [0, 32], sizes = [8, 32], strides = [1, 1]} : vector<8x96xf32> to vector<8x32xf32>
    %178 = arith.mulf %177, %159 : vector<8x32xf32>
    %179 = vector.extract_strided_slice %174 {offsets = [0, 0], sizes = [8, 32], strides = [1, 1]} : vector<8x96xf32> to vector<8x32xf32>
    %180 = arith.mulf %179, %176 : vector<8x32xf32>
    %181 = arith.addf %178, %180 : vector<8x32xf32>
    %182 = vector.extract_strided_slice %174 {offsets = [0, 64], sizes = [8, 32], strides = [1, 1]} : vector<8x96xf32> to vector<8x32xf32>
    %183 = math.tanh %181 : vector<8x32xf32>
    %184 = arith.mulf %182, %183 : vector<8x32xf32>
    %185 = arith.truncf %184 : vector<8x32xf32> to vector<8x32xbf16>
    %186 = tpu.concatenate %31, %53, %75, %97, %119, %141, %163, %185 in 0 : vector<8x32xbf16>, vector<8x32xbf16>, vector<8x32xbf16>, vector<8x32xbf16>, vector<8x32xbf16>, vector<8x32xbf16>, vector<8x32xbf16>, vector<8x32xbf16> -> vector<64x32xbf16>
    %c0_42 = arith.constant 0 : index
    %c0_43 = arith.constant 0 : index
    %187 = vector.load %arg5[%c0_42, %c0_43] : memref<32x128xbf16, #tpu.memory_space<vmem>>, vector<32x128xbf16>
    %cst_44 = arith.constant dense<0.000000e+00> : vector<64x128xf32>
    %188 = tpu.matmul %186, %187, %cst_44 {dimension_numbers = #tpu.dot_dimension_numbers<[1], [0], [0], [1], [0, 0, 1, 1], [], []>} : vector<64x32xbf16>, vector<32x128xbf16>, vector<64x128xf32> -> vector<64x128xf32>
    %c0_45 = arith.constant 0 : index
    %c0_46 = arith.constant 0 : index
    %189 = vector.load %arg7[%c0_45, %c0_46] : memref<1x128xf32, #tpu.memory_space<vmem>>, vector<1x128xf32>
    %190 = vector.broadcast %189 : vector<1x128xf32> to vector<64x128xf32>
    %191 = arith.addf %188, %190 : vector<64x128xf32>
    %c0_47 = arith.constant 0 : index
    %c0_48 = arith.constant 0 : index
    %192 = vector.load %arg6[%c0_47, %c0_48] : memref<32x128xbf16, #tpu.memory_space<vmem>>, vector<32x128xbf16>
    %c0_49 = arith.constant 0 : index
    %c0_50 = arith.constant 0 : index
    %193 = vector.load %arg8[%c0_49, %c0_50] : memref<1x32xf32, #tpu.memory_space<vmem>>, vector<1x32xf32>
    %c0_51 = arith.constant 0 : index
    %c0_52 = arith.constant 0 : index
    %194 = vector.load %arg9[%c0_51, %c0_52] : memref<1x1xf32, #tpu.memory_space<vmem>>, vector<1x1xf32>
    %cst_53 = arith.constant 0.000000e+00 : bf16
    %195 = vector.broadcast %cst_53 : bf16 to vector<8x32xbf16>
    %cst_54 = arith.constant 0.000000e+00 : f32
    %196 = vector.broadcast %cst_54 : f32 to vector<8x32xf32>
    %197 = vector.extract_strided_slice %191 {offsets = [0, 0], sizes = [8, 128], strides = [1, 1]} : vector<64x128xf32> to vector<8x128xf32>
    %cst_55 = arith.constant dense<0.000000e+00> : vector<8x128xf32>
    %198 = tpu.matmul %195, %192, %cst_55 {dimension_numbers = #tpu.dot_dimension_numbers<[1], [0], [0], [1], [0, 0, 1, 1], [], []>} : vector<8x32xbf16>, vector<32x128xbf16>, vector<8x128xf32> -> vector<8x128xf32>
    %199 = arith.addf %197, %198 : vector<8x128xf32>
    %200 = vector.extract_strided_slice %199 {offsets = [0, 0], sizes = [8, 96], strides = [1, 1]} : vector<8x128xf32> to vector<8x96xf32>
    %cst_56 = arith.constant 5.000000e-01 : f32
    %201 = vector.broadcast %cst_56 : f32 to vector<8x96xf32>
    %202 = arith.mulf %201, %200 : vector<8x96xf32>
    %203 = math.tanh %202 : vector<8x96xf32>
    %cst_57 = arith.constant 1.000000e+00 : f32
    %204 = vector.broadcast %cst_57 : f32 to vector<8x96xf32>
    %205 = arith.addf %203, %204 : vector<8x96xf32>
    %cst_58 = arith.constant 5.000000e-01 : f32
    %206 = vector.broadcast %cst_58 : f32 to vector<8x96xf32>
    %207 = arith.mulf %206, %205 : vector<8x96xf32>
    %208 = vector.extract_strided_slice %199 {offsets = [0, 96], sizes = [8, 32], strides = [1, 1]} : vector<8x128xf32> to vector<8x32xf32>
    %209 = math.tanh %208 : vector<8x32xf32>
    %210 = vector.extract_strided_slice %207 {offsets = [0, 32], sizes = [8, 32], strides = [1, 1]} : vector<8x96xf32> to vector<8x32xf32>
    %211 = arith.mulf %210, %196 : vector<8x32xf32>
    %212 = vector.extract_strided_slice %207 {offsets = [0, 0], sizes = [8, 32], strides = [1, 1]} : vector<8x96xf32> to vector<8x32xf32>
    %213 = arith.mulf %212, %209 : vector<8x32xf32>
    %214 = arith.addf %211, %213 : vector<8x32xf32>
    %215 = vector.extract_strided_slice %207 {offsets = [0, 64], sizes = [8, 32], strides = [1, 1]} : vector<8x96xf32> to vector<8x32xf32>
    %216 = math.tanh %214 : vector<8x32xf32>
    %217 = arith.mulf %215, %216 : vector<8x32xf32>
    %218 = arith.truncf %217 : vector<8x32xf32> to vector<8x32xbf16>
    %219 = vector.broadcast %193 : vector<1x32xf32> to vector<8x32xf32>
    %220 = arith.mulf %217, %219 : vector<8x32xf32>
    %cst_59 = arith.constant dense<0.000000e+00> : vector<8xf32>
    %221 = vector.multi_reduction <add>, %220, %cst_59 [1] : vector<8x32xf32> to vector<8xf32>
    %222 = vector.shape_cast %221 : vector<8xf32> to vector<8x1xf32>
    %223 = vector.broadcast %194 : vector<1x1xf32> to vector<8x1xf32>
    %224 = arith.addf %222, %223 : vector<8x1xf32>
    %cst_60 = arith.constant 1.000000e+00 : f32
    %225 = vector.broadcast %cst_60 : f32 to vector<8x1xf32>
    %226 = vector.extract_strided_slice %191 {offsets = [8, 0], sizes = [8, 128], strides = [1, 1]} : vector<64x128xf32> to vector<8x128xf32>
    %cst_61 = arith.constant dense<0.000000e+00> : vector<8x128xf32>
    %227 = tpu.matmul %218, %192, %cst_61 {dimension_numbers = #tpu.dot_dimension_numbers<[1], [0], [0], [1], [0, 0, 1, 1], [], []>} : vector<8x32xbf16>, vector<32x128xbf16>, vector<8x128xf32> -> vector<8x128xf32>
    %228 = arith.addf %226, %227 : vector<8x128xf32>
    %229 = vector.extract_strided_slice %228 {offsets = [0, 0], sizes = [8, 96], strides = [1, 1]} : vector<8x128xf32> to vector<8x96xf32>
    %cst_62 = arith.constant 5.000000e-01 : f32
    %230 = vector.broadcast %cst_62 : f32 to vector<8x96xf32>
    %231 = arith.mulf %230, %229 : vector<8x96xf32>
    %232 = math.tanh %231 : vector<8x96xf32>
    %cst_63 = arith.constant 1.000000e+00 : f32
    %233 = vector.broadcast %cst_63 : f32 to vector<8x96xf32>
    %234 = arith.addf %232, %233 : vector<8x96xf32>
    %cst_64 = arith.constant 5.000000e-01 : f32
    %235 = vector.broadcast %cst_64 : f32 to vector<8x96xf32>
    %236 = arith.mulf %235, %234 : vector<8x96xf32>
    %237 = vector.extract_strided_slice %228 {offsets = [0, 96], sizes = [8, 32], strides = [1, 1]} : vector<8x128xf32> to vector<8x32xf32>
    %238 = math.tanh %237 : vector<8x32xf32>
    %239 = vector.extract_strided_slice %236 {offsets = [0, 32], sizes = [8, 32], strides = [1, 1]} : vector<8x96xf32> to vector<8x32xf32>
    %240 = arith.mulf %239, %214 : vector<8x32xf32>
    %241 = vector.extract_strided_slice %236 {offsets = [0, 0], sizes = [8, 32], strides = [1, 1]} : vector<8x96xf32> to vector<8x32xf32>
    %242 = arith.mulf %241, %238 : vector<8x32xf32>
    %243 = arith.addf %240, %242 : vector<8x32xf32>
    %244 = vector.extract_strided_slice %236 {offsets = [0, 64], sizes = [8, 32], strides = [1, 1]} : vector<8x96xf32> to vector<8x32xf32>
    %245 = math.tanh %243 : vector<8x32xf32>
    %246 = arith.mulf %244, %245 : vector<8x32xf32>
    %247 = arith.truncf %246 : vector<8x32xf32> to vector<8x32xbf16>
    %248 = vector.broadcast %193 : vector<1x32xf32> to vector<8x32xf32>
    %249 = arith.mulf %246, %248 : vector<8x32xf32>
    %cst_65 = arith.constant dense<0.000000e+00> : vector<8xf32>
    %250 = vector.multi_reduction <add>, %249, %cst_65 [1] : vector<8x32xf32> to vector<8xf32>
    %251 = vector.shape_cast %250 : vector<8xf32> to vector<8x1xf32>
    %252 = vector.broadcast %194 : vector<1x1xf32> to vector<8x1xf32>
    %253 = arith.addf %251, %252 : vector<8x1xf32>
    %254 = arith.maximumf %224, %253 : vector<8x1xf32>
    %255 = arith.subf %224, %254 : vector<8x1xf32>
    %256 = math.exp %255 : vector<8x1xf32>
    %257 = arith.subf %253, %254 : vector<8x1xf32>
    %258 = math.exp %257 : vector<8x1xf32>
    %259 = arith.mulf %256, %225 : vector<8x1xf32>
    %260 = arith.addf %259, %258 : vector<8x1xf32>
    %261 = vector.broadcast %256 : vector<8x1xf32> to vector<8x32xf32>
    %262 = arith.mulf %261, %217 : vector<8x32xf32>
    %263 = vector.broadcast %258 : vector<8x1xf32> to vector<8x32xf32>
    %264 = arith.mulf %263, %246 : vector<8x32xf32>
    %265 = arith.addf %262, %264 : vector<8x32xf32>
    %266 = vector.extract_strided_slice %191 {offsets = [16, 0], sizes = [8, 128], strides = [1, 1]} : vector<64x128xf32> to vector<8x128xf32>
    %cst_66 = arith.constant dense<0.000000e+00> : vector<8x128xf32>
    %267 = tpu.matmul %247, %192, %cst_66 {dimension_numbers = #tpu.dot_dimension_numbers<[1], [0], [0], [1], [0, 0, 1, 1], [], []>} : vector<8x32xbf16>, vector<32x128xbf16>, vector<8x128xf32> -> vector<8x128xf32>
    %268 = arith.addf %266, %267 : vector<8x128xf32>
    %269 = vector.extract_strided_slice %268 {offsets = [0, 0], sizes = [8, 96], strides = [1, 1]} : vector<8x128xf32> to vector<8x96xf32>
    %cst_67 = arith.constant 5.000000e-01 : f32
    %270 = vector.broadcast %cst_67 : f32 to vector<8x96xf32>
    %271 = arith.mulf %270, %269 : vector<8x96xf32>
    %272 = math.tanh %271 : vector<8x96xf32>
    %cst_68 = arith.constant 1.000000e+00 : f32
    %273 = vector.broadcast %cst_68 : f32 to vector<8x96xf32>
    %274 = arith.addf %272, %273 : vector<8x96xf32>
    %cst_69 = arith.constant 5.000000e-01 : f32
    %275 = vector.broadcast %cst_69 : f32 to vector<8x96xf32>
    %276 = arith.mulf %275, %274 : vector<8x96xf32>
    %277 = vector.extract_strided_slice %268 {offsets = [0, 96], sizes = [8, 32], strides = [1, 1]} : vector<8x128xf32> to vector<8x32xf32>
    %278 = math.tanh %277 : vector<8x32xf32>
    %279 = vector.extract_strided_slice %276 {offsets = [0, 32], sizes = [8, 32], strides = [1, 1]} : vector<8x96xf32> to vector<8x32xf32>
    %280 = arith.mulf %279, %243 : vector<8x32xf32>
    %281 = vector.extract_strided_slice %276 {offsets = [0, 0], sizes = [8, 32], strides = [1, 1]} : vector<8x96xf32> to vector<8x32xf32>
    %282 = arith.mulf %281, %278 : vector<8x32xf32>
    %283 = arith.addf %280, %282 : vector<8x32xf32>
    %284 = vector.extract_strided_slice %276 {offsets = [0, 64], sizes = [8, 32], strides = [1, 1]} : vector<8x96xf32> to vector<8x32xf32>
    %285 = math.tanh %283 : vector<8x32xf32>
    %286 = arith.mulf %284, %285 : vector<8x32xf32>
    %287 = arith.truncf %286 : vector<8x32xf32> to vector<8x32xbf16>
    %288 = vector.broadcast %193 : vector<1x32xf32> to vector<8x32xf32>
    %289 = arith.mulf %286, %288 : vector<8x32xf32>
    %cst_70 = arith.constant dense<0.000000e+00> : vector<8xf32>
    %290 = vector.multi_reduction <add>, %289, %cst_70 [1] : vector<8x32xf32> to vector<8xf32>
    %291 = vector.shape_cast %290 : vector<8xf32> to vector<8x1xf32>
    %292 = vector.broadcast %194 : vector<1x1xf32> to vector<8x1xf32>
    %293 = arith.addf %291, %292 : vector<8x1xf32>
    %294 = arith.maximumf %254, %293 : vector<8x1xf32>
    %295 = arith.subf %254, %294 : vector<8x1xf32>
    %296 = math.exp %295 : vector<8x1xf32>
    %297 = arith.subf %293, %294 : vector<8x1xf32>
    %298 = math.exp %297 : vector<8x1xf32>
    %299 = arith.mulf %296, %260 : vector<8x1xf32>
    %300 = arith.addf %299, %298 : vector<8x1xf32>
    %301 = vector.broadcast %296 : vector<8x1xf32> to vector<8x32xf32>
    %302 = arith.mulf %301, %265 : vector<8x32xf32>
    %303 = vector.broadcast %298 : vector<8x1xf32> to vector<8x32xf32>
    %304 = arith.mulf %303, %286 : vector<8x32xf32>
    %305 = arith.addf %302, %304 : vector<8x32xf32>
    %306 = vector.extract_strided_slice %191 {offsets = [24, 0], sizes = [8, 128], strides = [1, 1]} : vector<64x128xf32> to vector<8x128xf32>
    %cst_71 = arith.constant dense<0.000000e+00> : vector<8x128xf32>
    %307 = tpu.matmul %287, %192, %cst_71 {dimension_numbers = #tpu.dot_dimension_numbers<[1], [0], [0], [1], [0, 0, 1, 1], [], []>} : vector<8x32xbf16>, vector<32x128xbf16>, vector<8x128xf32> -> vector<8x128xf32>
    %308 = arith.addf %306, %307 : vector<8x128xf32>
    %309 = vector.extract_strided_slice %308 {offsets = [0, 0], sizes = [8, 96], strides = [1, 1]} : vector<8x128xf32> to vector<8x96xf32>
    %cst_72 = arith.constant 5.000000e-01 : f32
    %310 = vector.broadcast %cst_72 : f32 to vector<8x96xf32>
    %311 = arith.mulf %310, %309 : vector<8x96xf32>
    %312 = math.tanh %311 : vector<8x96xf32>
    %cst_73 = arith.constant 1.000000e+00 : f32
    %313 = vector.broadcast %cst_73 : f32 to vector<8x96xf32>
    %314 = arith.addf %312, %313 : vector<8x96xf32>
    %cst_74 = arith.constant 5.000000e-01 : f32
    %315 = vector.broadcast %cst_74 : f32 to vector<8x96xf32>
    %316 = arith.mulf %315, %314 : vector<8x96xf32>
    %317 = vector.extract_strided_slice %308 {offsets = [0, 96], sizes = [8, 32], strides = [1, 1]} : vector<8x128xf32> to vector<8x32xf32>
    %318 = math.tanh %317 : vector<8x32xf32>
    %319 = vector.extract_strided_slice %316 {offsets = [0, 32], sizes = [8, 32], strides = [1, 1]} : vector<8x96xf32> to vector<8x32xf32>
    %320 = arith.mulf %319, %283 : vector<8x32xf32>
    %321 = vector.extract_strided_slice %316 {offsets = [0, 0], sizes = [8, 32], strides = [1, 1]} : vector<8x96xf32> to vector<8x32xf32>
    %322 = arith.mulf %321, %318 : vector<8x32xf32>
    %323 = arith.addf %320, %322 : vector<8x32xf32>
    %324 = vector.extract_strided_slice %316 {offsets = [0, 64], sizes = [8, 32], strides = [1, 1]} : vector<8x96xf32> to vector<8x32xf32>
    %325 = math.tanh %323 : vector<8x32xf32>
    %326 = arith.mulf %324, %325 : vector<8x32xf32>
    %327 = arith.truncf %326 : vector<8x32xf32> to vector<8x32xbf16>
    %328 = vector.broadcast %193 : vector<1x32xf32> to vector<8x32xf32>
    %329 = arith.mulf %326, %328 : vector<8x32xf32>
    %cst_75 = arith.constant dense<0.000000e+00> : vector<8xf32>
    %330 = vector.multi_reduction <add>, %329, %cst_75 [1] : vector<8x32xf32> to vector<8xf32>
    %331 = vector.shape_cast %330 : vector<8xf32> to vector<8x1xf32>
    %332 = vector.broadcast %194 : vector<1x1xf32> to vector<8x1xf32>
    %333 = arith.addf %331, %332 : vector<8x1xf32>
    %334 = arith.maximumf %294, %333 : vector<8x1xf32>
    %335 = arith.subf %294, %334 : vector<8x1xf32>
    %336 = math.exp %335 : vector<8x1xf32>
    %337 = arith.subf %333, %334 : vector<8x1xf32>
    %338 = math.exp %337 : vector<8x1xf32>
    %339 = arith.mulf %336, %300 : vector<8x1xf32>
    %340 = arith.addf %339, %338 : vector<8x1xf32>
    %341 = vector.broadcast %336 : vector<8x1xf32> to vector<8x32xf32>
    %342 = arith.mulf %341, %305 : vector<8x32xf32>
    %343 = vector.broadcast %338 : vector<8x1xf32> to vector<8x32xf32>
    %344 = arith.mulf %343, %326 : vector<8x32xf32>
    %345 = arith.addf %342, %344 : vector<8x32xf32>
    %346 = vector.extract_strided_slice %191 {offsets = [32, 0], sizes = [8, 128], strides = [1, 1]} : vector<64x128xf32> to vector<8x128xf32>
    %cst_76 = arith.constant dense<0.000000e+00> : vector<8x128xf32>
    %347 = tpu.matmul %327, %192, %cst_76 {dimension_numbers = #tpu.dot_dimension_numbers<[1], [0], [0], [1], [0, 0, 1, 1], [], []>} : vector<8x32xbf16>, vector<32x128xbf16>, vector<8x128xf32> -> vector<8x128xf32>
    %348 = arith.addf %346, %347 : vector<8x128xf32>
    %349 = vector.extract_strided_slice %348 {offsets = [0, 0], sizes = [8, 96], strides = [1, 1]} : vector<8x128xf32> to vector<8x96xf32>
    %cst_77 = arith.constant 5.000000e-01 : f32
    %350 = vector.broadcast %cst_77 : f32 to vector<8x96xf32>
    %351 = arith.mulf %350, %349 : vector<8x96xf32>
    %352 = math.tanh %351 : vector<8x96xf32>
    %cst_78 = arith.constant 1.000000e+00 : f32
    %353 = vector.broadcast %cst_78 : f32 to vector<8x96xf32>
    %354 = arith.addf %352, %353 : vector<8x96xf32>
    %cst_79 = arith.constant 5.000000e-01 : f32
    %355 = vector.broadcast %cst_79 : f32 to vector<8x96xf32>
    %356 = arith.mulf %355, %354 : vector<8x96xf32>
    %357 = vector.extract_strided_slice %348 {offsets = [0, 96], sizes = [8, 32], strides = [1, 1]} : vector<8x128xf32> to vector<8x32xf32>
    %358 = math.tanh %357 : vector<8x32xf32>
    %359 = vector.extract_strided_slice %356 {offsets = [0, 32], sizes = [8, 32], strides = [1, 1]} : vector<8x96xf32> to vector<8x32xf32>
    %360 = arith.mulf %359, %323 : vector<8x32xf32>
    %361 = vector.extract_strided_slice %356 {offsets = [0, 0], sizes = [8, 32], strides = [1, 1]} : vector<8x96xf32> to vector<8x32xf32>
    %362 = arith.mulf %361, %358 : vector<8x32xf32>
    %363 = arith.addf %360, %362 : vector<8x32xf32>
    %364 = vector.extract_strided_slice %356 {offsets = [0, 64], sizes = [8, 32], strides = [1, 1]} : vector<8x96xf32> to vector<8x32xf32>
    %365 = math.tanh %363 : vector<8x32xf32>
    %366 = arith.mulf %364, %365 : vector<8x32xf32>
    %367 = arith.truncf %366 : vector<8x32xf32> to vector<8x32xbf16>
    %368 = vector.broadcast %193 : vector<1x32xf32> to vector<8x32xf32>
    %369 = arith.mulf %366, %368 : vector<8x32xf32>
    %cst_80 = arith.constant dense<0.000000e+00> : vector<8xf32>
    %370 = vector.multi_reduction <add>, %369, %cst_80 [1] : vector<8x32xf32> to vector<8xf32>
    %371 = vector.shape_cast %370 : vector<8xf32> to vector<8x1xf32>
    %372 = vector.broadcast %194 : vector<1x1xf32> to vector<8x1xf32>
    %373 = arith.addf %371, %372 : vector<8x1xf32>
    %374 = arith.maximumf %334, %373 : vector<8x1xf32>
    %375 = arith.subf %334, %374 : vector<8x1xf32>
    %376 = math.exp %375 : vector<8x1xf32>
    %377 = arith.subf %373, %374 : vector<8x1xf32>
    %378 = math.exp %377 : vector<8x1xf32>
    %379 = arith.mulf %376, %340 : vector<8x1xf32>
    %380 = arith.addf %379, %378 : vector<8x1xf32>
    %381 = vector.broadcast %376 : vector<8x1xf32> to vector<8x32xf32>
    %382 = arith.mulf %381, %345 : vector<8x32xf32>
    %383 = vector.broadcast %378 : vector<8x1xf32> to vector<8x32xf32>
    %384 = arith.mulf %383, %366 : vector<8x32xf32>
    %385 = arith.addf %382, %384 : vector<8x32xf32>
    %386 = vector.extract_strided_slice %191 {offsets = [40, 0], sizes = [8, 128], strides = [1, 1]} : vector<64x128xf32> to vector<8x128xf32>
    %cst_81 = arith.constant dense<0.000000e+00> : vector<8x128xf32>
    %387 = tpu.matmul %367, %192, %cst_81 {dimension_numbers = #tpu.dot_dimension_numbers<[1], [0], [0], [1], [0, 0, 1, 1], [], []>} : vector<8x32xbf16>, vector<32x128xbf16>, vector<8x128xf32> -> vector<8x128xf32>
    %388 = arith.addf %386, %387 : vector<8x128xf32>
    %389 = vector.extract_strided_slice %388 {offsets = [0, 0], sizes = [8, 96], strides = [1, 1]} : vector<8x128xf32> to vector<8x96xf32>
    %cst_82 = arith.constant 5.000000e-01 : f32
    %390 = vector.broadcast %cst_82 : f32 to vector<8x96xf32>
    %391 = arith.mulf %390, %389 : vector<8x96xf32>
    %392 = math.tanh %391 : vector<8x96xf32>
    %cst_83 = arith.constant 1.000000e+00 : f32
    %393 = vector.broadcast %cst_83 : f32 to vector<8x96xf32>
    %394 = arith.addf %392, %393 : vector<8x96xf32>
    %cst_84 = arith.constant 5.000000e-01 : f32
    %395 = vector.broadcast %cst_84 : f32 to vector<8x96xf32>
    %396 = arith.mulf %395, %394 : vector<8x96xf32>
    %397 = vector.extract_strided_slice %388 {offsets = [0, 96], sizes = [8, 32], strides = [1, 1]} : vector<8x128xf32> to vector<8x32xf32>
    %398 = math.tanh %397 : vector<8x32xf32>
    %399 = vector.extract_strided_slice %396 {offsets = [0, 32], sizes = [8, 32], strides = [1, 1]} : vector<8x96xf32> to vector<8x32xf32>
    %400 = arith.mulf %399, %363 : vector<8x32xf32>
    %401 = vector.extract_strided_slice %396 {offsets = [0, 0], sizes = [8, 32], strides = [1, 1]} : vector<8x96xf32> to vector<8x32xf32>
    %402 = arith.mulf %401, %398 : vector<8x32xf32>
    %403 = arith.addf %400, %402 : vector<8x32xf32>
    %404 = vector.extract_strided_slice %396 {offsets = [0, 64], sizes = [8, 32], strides = [1, 1]} : vector<8x96xf32> to vector<8x32xf32>
    %405 = math.tanh %403 : vector<8x32xf32>
    %406 = arith.mulf %404, %405 : vector<8x32xf32>
    %407 = arith.truncf %406 : vector<8x32xf32> to vector<8x32xbf16>
    %408 = vector.broadcast %193 : vector<1x32xf32> to vector<8x32xf32>
    %409 = arith.mulf %406, %408 : vector<8x32xf32>
    %cst_85 = arith.constant dense<0.000000e+00> : vector<8xf32>
    %410 = vector.multi_reduction <add>, %409, %cst_85 [1] : vector<8x32xf32> to vector<8xf32>
    %411 = vector.shape_cast %410 : vector<8xf32> to vector<8x1xf32>
    %412 = vector.broadcast %194 : vector<1x1xf32> to vector<8x1xf32>
    %413 = arith.addf %411, %412 : vector<8x1xf32>
    %414 = arith.maximumf %374, %413 : vector<8x1xf32>
    %415 = arith.subf %374, %414 : vector<8x1xf32>
    %416 = math.exp %415 : vector<8x1xf32>
    %417 = arith.subf %413, %414 : vector<8x1xf32>
    %418 = math.exp %417 : vector<8x1xf32>
    %419 = arith.mulf %416, %380 : vector<8x1xf32>
    %420 = arith.addf %419, %418 : vector<8x1xf32>
    %421 = vector.broadcast %416 : vector<8x1xf32> to vector<8x32xf32>
    %422 = arith.mulf %421, %385 : vector<8x32xf32>
    %423 = vector.broadcast %418 : vector<8x1xf32> to vector<8x32xf32>
    %424 = arith.mulf %423, %406 : vector<8x32xf32>
    %425 = arith.addf %422, %424 : vector<8x32xf32>
    %426 = vector.extract_strided_slice %191 {offsets = [48, 0], sizes = [8, 128], strides = [1, 1]} : vector<64x128xf32> to vector<8x128xf32>
    %cst_86 = arith.constant dense<0.000000e+00> : vector<8x128xf32>
    %427 = tpu.matmul %407, %192, %cst_86 {dimension_numbers = #tpu.dot_dimension_numbers<[1], [0], [0], [1], [0, 0, 1, 1], [], []>} : vector<8x32xbf16>, vector<32x128xbf16>, vector<8x128xf32> -> vector<8x128xf32>
    %428 = arith.addf %426, %427 : vector<8x128xf32>
    %429 = vector.extract_strided_slice %428 {offsets = [0, 0], sizes = [8, 96], strides = [1, 1]} : vector<8x128xf32> to vector<8x96xf32>
    %cst_87 = arith.constant 5.000000e-01 : f32
    %430 = vector.broadcast %cst_87 : f32 to vector<8x96xf32>
    %431 = arith.mulf %430, %429 : vector<8x96xf32>
    %432 = math.tanh %431 : vector<8x96xf32>
    %cst_88 = arith.constant 1.000000e+00 : f32
    %433 = vector.broadcast %cst_88 : f32 to vector<8x96xf32>
    %434 = arith.addf %432, %433 : vector<8x96xf32>
    %cst_89 = arith.constant 5.000000e-01 : f32
    %435 = vector.broadcast %cst_89 : f32 to vector<8x96xf32>
    %436 = arith.mulf %435, %434 : vector<8x96xf32>
    %437 = vector.extract_strided_slice %428 {offsets = [0, 96], sizes = [8, 32], strides = [1, 1]} : vector<8x128xf32> to vector<8x32xf32>
    %438 = math.tanh %437 : vector<8x32xf32>
    %439 = vector.extract_strided_slice %436 {offsets = [0, 32], sizes = [8, 32], strides = [1, 1]} : vector<8x96xf32> to vector<8x32xf32>
    %440 = arith.mulf %439, %403 : vector<8x32xf32>
    %441 = vector.extract_strided_slice %436 {offsets = [0, 0], sizes = [8, 32], strides = [1, 1]} : vector<8x96xf32> to vector<8x32xf32>
    %442 = arith.mulf %441, %438 : vector<8x32xf32>
    %443 = arith.addf %440, %442 : vector<8x32xf32>
    %444 = vector.extract_strided_slice %436 {offsets = [0, 64], sizes = [8, 32], strides = [1, 1]} : vector<8x96xf32> to vector<8x32xf32>
    %445 = math.tanh %443 : vector<8x32xf32>
    %446 = arith.mulf %444, %445 : vector<8x32xf32>
    %447 = arith.truncf %446 : vector<8x32xf32> to vector<8x32xbf16>
    %448 = vector.broadcast %193 : vector<1x32xf32> to vector<8x32xf32>
    %449 = arith.mulf %446, %448 : vector<8x32xf32>
    %cst_90 = arith.constant dense<0.000000e+00> : vector<8xf32>
    %450 = vector.multi_reduction <add>, %449, %cst_90 [1] : vector<8x32xf32> to vector<8xf32>
    %451 = vector.shape_cast %450 : vector<8xf32> to vector<8x1xf32>
    %452 = vector.broadcast %194 : vector<1x1xf32> to vector<8x1xf32>
    %453 = arith.addf %451, %452 : vector<8x1xf32>
    %454 = arith.maximumf %414, %453 : vector<8x1xf32>
    %455 = arith.subf %414, %454 : vector<8x1xf32>
    %456 = math.exp %455 : vector<8x1xf32>
    %457 = arith.subf %453, %454 : vector<8x1xf32>
    %458 = math.exp %457 : vector<8x1xf32>
    %459 = arith.mulf %456, %420 : vector<8x1xf32>
    %460 = arith.addf %459, %458 : vector<8x1xf32>
    %461 = vector.broadcast %456 : vector<8x1xf32> to vector<8x32xf32>
    %462 = arith.mulf %461, %425 : vector<8x32xf32>
    %463 = vector.broadcast %458 : vector<8x1xf32> to vector<8x32xf32>
    %464 = arith.mulf %463, %446 : vector<8x32xf32>
    %465 = arith.addf %462, %464 : vector<8x32xf32>
    %466 = vector.extract_strided_slice %191 {offsets = [56, 0], sizes = [8, 128], strides = [1, 1]} : vector<64x128xf32> to vector<8x128xf32>
    %cst_91 = arith.constant dense<0.000000e+00> : vector<8x128xf32>
    %467 = tpu.matmul %447, %192, %cst_91 {dimension_numbers = #tpu.dot_dimension_numbers<[1], [0], [0], [1], [0, 0, 1, 1], [], []>} : vector<8x32xbf16>, vector<32x128xbf16>, vector<8x128xf32> -> vector<8x128xf32>
    %468 = arith.addf %466, %467 : vector<8x128xf32>
    %469 = vector.extract_strided_slice %468 {offsets = [0, 0], sizes = [8, 96], strides = [1, 1]} : vector<8x128xf32> to vector<8x96xf32>
    %cst_92 = arith.constant 5.000000e-01 : f32
    %470 = vector.broadcast %cst_92 : f32 to vector<8x96xf32>
    %471 = arith.mulf %470, %469 : vector<8x96xf32>
    %472 = math.tanh %471 : vector<8x96xf32>
    %cst_93 = arith.constant 1.000000e+00 : f32
    %473 = vector.broadcast %cst_93 : f32 to vector<8x96xf32>
    %474 = arith.addf %472, %473 : vector<8x96xf32>
    %cst_94 = arith.constant 5.000000e-01 : f32
    %475 = vector.broadcast %cst_94 : f32 to vector<8x96xf32>
    %476 = arith.mulf %475, %474 : vector<8x96xf32>
    %477 = vector.extract_strided_slice %468 {offsets = [0, 96], sizes = [8, 32], strides = [1, 1]} : vector<8x128xf32> to vector<8x32xf32>
    %478 = math.tanh %477 : vector<8x32xf32>
    %479 = vector.extract_strided_slice %476 {offsets = [0, 32], sizes = [8, 32], strides = [1, 1]} : vector<8x96xf32> to vector<8x32xf32>
    %480 = arith.mulf %479, %443 : vector<8x32xf32>
    %481 = vector.extract_strided_slice %476 {offsets = [0, 0], sizes = [8, 32], strides = [1, 1]} : vector<8x96xf32> to vector<8x32xf32>
    %482 = arith.mulf %481, %478 : vector<8x32xf32>
    %483 = arith.addf %480, %482 : vector<8x32xf32>
    %484 = vector.extract_strided_slice %476 {offsets = [0, 64], sizes = [8, 32], strides = [1, 1]} : vector<8x96xf32> to vector<8x32xf32>
    %485 = math.tanh %483 : vector<8x32xf32>
    %486 = arith.mulf %484, %485 : vector<8x32xf32>
    %487 = vector.broadcast %193 : vector<1x32xf32> to vector<8x32xf32>
    %488 = arith.mulf %486, %487 : vector<8x32xf32>
    %cst_95 = arith.constant dense<0.000000e+00> : vector<8xf32>
    %489 = vector.multi_reduction <add>, %488, %cst_95 [1] : vector<8x32xf32> to vector<8xf32>
    %490 = vector.shape_cast %489 : vector<8xf32> to vector<8x1xf32>
    %491 = vector.broadcast %194 : vector<1x1xf32> to vector<8x1xf32>
    %492 = arith.addf %490, %491 : vector<8x1xf32>
    %493 = arith.maximumf %454, %492 : vector<8x1xf32>
    %494 = arith.subf %454, %493 : vector<8x1xf32>
    %495 = math.exp %494 : vector<8x1xf32>
    %496 = arith.subf %492, %493 : vector<8x1xf32>
    %497 = math.exp %496 : vector<8x1xf32>
    %498 = arith.mulf %495, %460 : vector<8x1xf32>
    %499 = arith.addf %498, %497 : vector<8x1xf32>
    %500 = vector.broadcast %495 : vector<8x1xf32> to vector<8x32xf32>
    %501 = arith.mulf %500, %465 : vector<8x32xf32>
    %502 = vector.broadcast %497 : vector<8x1xf32> to vector<8x32xf32>
    %503 = arith.mulf %502, %486 : vector<8x32xf32>
    %504 = arith.addf %501, %503 : vector<8x32xf32>
    %505 = tpu.reciprocal %499 {approx = true} : vector<8x1xf32> -> vector<8x1xf32>
    %506 = vector.broadcast %505 : vector<8x1xf32> to vector<8x32xf32>
    %507 = arith.mulf %504, %506 : vector<8x32xf32>
    %508 = arith.truncf %507 : vector<8x32xf32> to vector<8x32xbf16>
    %c0_96 = arith.constant 0 : index
    %c0_97 = arith.constant 0 : index
    %509 = vector.load %arg10[%c0_96, %c0_97] : memref<32x32xbf16, #tpu.memory_space<vmem>>, vector<32x32xbf16>
    %cst_98 = arith.constant dense<0.000000e+00> : vector<8x32xf32>
    %510 = tpu.matmul %508, %509, %cst_98 {dimension_numbers = #tpu.dot_dimension_numbers<[1], [0], [0], [1], [0, 0, 1, 1], [], []>} : vector<8x32xbf16>, vector<32x32xbf16>, vector<8x32xf32> -> vector<8x32xf32>
    %c0_99 = arith.constant 0 : index
    %c0_100 = arith.constant 0 : index
    %511 = vector.load %arg11[%c0_99, %c0_100] : memref<1x32xf32, #tpu.memory_space<vmem>>, vector<1x32xf32>
    %512 = vector.broadcast %511 : vector<1x32xf32> to vector<8x32xf32>
    %513 = arith.addf %510, %512 : vector<8x32xf32>
    %cst_101 = arith.constant 0.000000e+00 : f32
    %514 = vector.broadcast %cst_101 : f32 to vector<8x32xf32>
    %515 = arith.maximumf %513, %514 : vector<8x32xf32>
    %516 = arith.truncf %515 : vector<8x32xf32> to vector<8x32xbf16>
    %c0_102 = arith.constant 0 : index
    %c0_103 = arith.constant 0 : index
    %517 = vector.load %arg12[%c0_102, %c0_103] : memref<32x128xbf16, #tpu.memory_space<vmem>>, vector<32x128xbf16>
    %cst_104 = arith.constant dense<0.000000e+00> : vector<8x128xf32>
    %518 = tpu.matmul %516, %517, %cst_104 {dimension_numbers = #tpu.dot_dimension_numbers<[1], [0], [0], [1], [0, 0, 1, 1], [], []>} : vector<8x32xbf16>, vector<32x128xbf16>, vector<8x128xf32> -> vector<8x128xf32>
    %c0_105 = arith.constant 0 : index
    %c0_106 = arith.constant 0 : index
    %519 = vector.load %arg13[%c0_105, %c0_106] : memref<1x128xf32, #tpu.memory_space<vmem>>, vector<1x128xf32>
    %520 = vector.broadcast %519 : vector<1x128xf32> to vector<8x128xf32>
    %521 = arith.addf %518, %520 : vector<8x128xf32>
    %c0_107 = arith.constant 0 : index
    %c0_108 = arith.constant 0 : index
    %c0_109 = arith.constant 0 : index
    %522 = vector.load %arg14[%c0_107, %c0_108, %c0_109] : memref<1x8x128xf32, #tpu.memory_space<vmem>>, vector<1x8x128xf32>
    %523 = vector.shape_cast %522 : vector<1x8x128xf32> to vector<8x128xf32>
    %524 = vector.shape_cast %521 : vector<8x128xf32> to vector<1x8x128xf32>
    tpu.vector_store %arg14[%c0_107, %c0_108, %c0_109], %524 {strides = array<i32>} : memref<1x8x128xf32, #tpu.memory_space<vmem>>, vector<1x8x128xf32>,
    return
  }
  func.func @transform_0(%arg0: i32) -> (i32, i32, i32) {
    %c0_i32 = arith.constant 0 : i32
    %c0_i32_0 = arith.constant 0 : i32
    %c0_i32_1 = arith.constant 0 : i32
    return %arg0, %c0_i32, %c0_i32_0 : i32, i32, i32
  }
  func.func @transform_1(%arg0: i32) -> (i32, i32) {
    %c0_i32 = arith.constant 0 : i32
    %c0_i32_0 = arith.constant 0 : i32
    %c0_i32_1 = arith.constant 0 : i32
    return %c0_i32, %c0_i32_0 : i32, i32
  }
  func.func @transform_2(%arg0: i32) -> (i32, i32) {
    %c0_i32 = arith.constant 0 : i32
    %c0_i32_0 = arith.constant 0 : i32
    %c0_i32_1 = arith.constant 0 : i32
    return %c0_i32, %c0_i32_0 : i32, i32
  }
  func.func @transform_3(%arg0: i32) -> (i32, i32) {
    %c0_i32 = arith.constant 0 : i32
    %c0_i32_0 = arith.constant 0 : i32
    %c0_i32_1 = arith.constant 0 : i32
    return %c0_i32, %c0_i32_0 : i32, i32
  }
  func.func @transform_4(%arg0: i32) -> (i32, i32) {
    %c0_i32 = arith.constant 0 : i32
    %c0_i32_0 = arith.constant 0 : i32
    %c0_i32_1 = arith.constant 0 : i32
    return %c0_i32, %c0_i32_0 : i32, i32
  }
  func.func @transform_5(%arg0: i32) -> (i32, i32) {
    %c0_i32 = arith.constant 0 : i32
    %c0_i32_0 = arith.constant 0 : i32
    %c0_i32_1 = arith.constant 0 : i32
    return %c0_i32, %c0_i32_0 : i32, i32
  }
  func.func @transform_6(%arg0: i32) -> (i32, i32) {
    %c0_i32 = arith.constant 0 : i32
    %c0_i32_0 = arith.constant 0 : i32
    %c0_i32_1 = arith.constant 0 : i32
    return %c0_i32, %c0_i32_0 : i32, i32
  }
  func.func @transform_7(%arg0: i32) -> (i32, i32) {
    %c0_i32 = arith.constant 0 : i32
    %c0_i32_0 = arith.constant 0 : i32
    %c0_i32_1 = arith.constant 0 : i32
    return %c0_i32, %c0_i32_0 : i32, i32
  }
  func.func @transform_8(%arg0: i32) -> (i32, i32) {
    %c0_i32 = arith.constant 0 : i32
    %c0_i32_0 = arith.constant 0 : i32
    %c0_i32_1 = arith.constant 0 : i32
    return %c0_i32, %c0_i32_0 : i32, i32
  }
  func.func @transform_9(%arg0: i32) -> (i32, i32) {
    %c0_i32 = arith.constant 0 : i32
    %c0_i32_0 = arith.constant 0 : i32
    %c0_i32_1 = arith.constant 0 : i32
    return %c0_i32, %c0_i32_0 : i32, i32
  }
  func.func @transform_10(%arg0: i32) -> (i32, i32) {
    %c0_i32 = arith.constant 0 : i32
    %c0_i32_0 = arith.constant 0 : i32
    %c0_i32_1 = arith.constant 0 : i32
    return %c0_i32, %c0_i32_0 : i32, i32
  }
  func.func @transform_11(%arg0: i32) -> (i32, i32) {
    %c0_i32 = arith.constant 0 : i32
    %c0_i32_0 = arith.constant 0 : i32
    %c0_i32_1 = arith.constant 0 : i32
    return %c0_i32, %c0_i32_0 : i32, i32
  }
  func.func @transform_12(%arg0: i32) -> (i32, i32) {
    %c0_i32 = arith.constant 0 : i32
    %c0_i32_0 = arith.constant 0 : i32
    %c0_i32_1 = arith.constant 0 : i32
    return %c0_i32, %c0_i32_0 : i32, i32
  }
  func.func @transform_13(%arg0: i32) -> (i32, i32, i32) {
    %c0_i32 = arith.constant 0 : i32
    %c0_i32_0 = arith.constant 0 : i32
    %c0_i32_1 = arith.constant 0 : i32
    return %arg0, %c0_i32, %c0_i32_0 : i32, i32, i32
  }
}

</mosaic_0001>

<llo_original>
// kernel: tpu_custom_call.1
$region0: #{tpu_custom_call.1}
  #allocation0 [shape = 'u32[]', space=smem, size = 0x4, offset = 0x4, fixed_abs, tag = 'smem constant byte address 0x4 - core index']
  #allocation1 [shape = 'u32[144,128]{1,0:T(1,128)}', space=vmem, size = 0x12000, scoped, tag = 'internal scratch']
  #allocation2 [shape = 'f32[1,1]{1,0:T(1,128)S(1)}', space=vmem, size = 0x200, scoped, tag = 'scoped memory for tpu_custom_call.1']
  %s0 = inlined_call_operand.vmem [shape: bf16[1,64,8], index: 0, kind: input, shape index: {}]
  %s1 = inlined_call_operand.hbm [shape: bf16[8,128], index: 1, kind: input, shape index: {}]
  %s2 = inlined_call_operand.vmem [shape: bf16[32,128], index: 2, kind: input, shape index: {}]
  %s3 = inlined_call_operand.vmem [shape: f32[1,128], index: 3, kind: input, shape index: {}]
  %s4 = inlined_call_operand.vmem [shape: bf16[32,128], index: 4, kind: input, shape index: {}]
  %s5 = inlined_call_operand.vmem [shape: bf16[32,128], index: 5, kind: input, shape index: {}]
  %s6 = inlined_call_operand.vmem [shape: f32[1,128], index: 6, kind: input, shape index: {}]
  %s7 = inlined_call_operand.hbm [shape: f32[1,32], index: 7, kind: input, shape index: {}]
  %s8 = inlined_call_operand.<no memory space> [shape: f32[1,1], index: 8, kind: input, shape index: {}]
  %s9 = inlined_call_operand.vmem [shape: bf16[32,32], index: 9, kind: input, shape index: {}]
  %s10 = inlined_call_operand.vmem [shape: f32[1,32], index: 10, kind: input, shape index: {}]
  %s11 = inlined_call_operand.hbm [shape: bf16[32,128], index: 11, kind: input, shape index: {}]
  %s12 = inlined_call_operand.vmem [shape: f32[1,128], index: 12, kind: input, shape index: {}]
  %s13 = inlined_call_operand.hbm [shape: f32[1,8,128], index: 13, kind: output, shape index: {}]
  %s14 = sld [smem:[#allocation0]]
  $region74: #{tpu_custom_call.1} parent=0
    _
  %s16 = ssub.s32 1, %s14
  %s17 = scalar_select 0, %s16, %s14
  %v18 = vstv %s8
  %19 = vst [vmem:[#allocation2] sm:$0x1] %v18
  $region1: #{tpu_custom_call.1} parent=0
    #allocation3 [shape = 'u8[2048]{0}', space=vmem, size = 0x800, scoped, tag = 'input window, operand 1, single buffered']
    #allocation4 [shape = 's32[1]{0}', space=sflag, size = 0x4, scoped, tag = 'scoped memory for tpu_custom_call.1']
    #allocation5 [shape = 's32[1]{0}', space=sflag, size = 0x4, scoped, tag = 'scoped memory for tpu_custom_call.1']
    #allocation6 [shape = 'u8[512]{0}', space=vmem, size = 0x400, scoped, tag = 'input window, operand 7, single buffered']
    #allocation7 [shape = 's32[1]{0}', space=sflag, size = 0x4, scoped, tag = 'scoped memory for tpu_custom_call.1']
    #allocation8 [shape = 'u8[8192]{0}', space=vmem, size = 0x2000, scoped, tag = 'input window, operand 11, single buffered']
    #allocation9 [shape = 'u8[4096]{0}', space=vmem, size = 0x1000, scoped, tag = 'output window, operand 0, single buffered']
    %20 = vsyncpa [#allocation4], 0
    %21 = vsyncpa [#allocation7], 0
    %22 = vsyncpa [#allocation5], 0
    // Predicated region
    $region2: #{tpu_custom_call.1} parent=1 // pred_check
      _
    $region3: #{tpu_custom_call.1} parent=1 // pred_check_branch
      %24 = sbr.rel (0) target = $region5
    $region4: #{tpu_custom_call.1} parent=1 // pred_region
      _
    $region5: #{tpu_custom_call.1} parent=1 // pred_fallthru
      _
    // Predicated region
    $region6: #{tpu_custom_call.1} parent=1 // pred_check
      _
    $region7: #{tpu_custom_call.1} parent=1 // pred_check_branch
      %26 = sbr.rel (0) target = $region9
    $region8: #{tpu_custom_call.1} parent=1 // pred_region
      %s28 = ssub.s32 64, 64
      %29 = vsyncadd [#allocation4], %s28
      %s31 = sshll.u32 [#allocation3], 4
      %s32 = int_to_ptr.vmem [resolvable:$true] %s31
      %34 = dma.hbm_to_vmem [thread:$0]  %s1, 64, %s32, [#allocation4]
    $region9: #{tpu_custom_call.1} parent=1 // pred_fallthru
      _
    // Predicated region
    $region10: #{tpu_custom_call.1} parent=1 // pred_check
      _
    $region11: #{tpu_custom_call.1} parent=1 // pred_check_branch
      %36 = sbr.rel (0) target = $region13
    $region12: #{tpu_custom_call.1} parent=1 // pred_region
      _
    $region13: #{tpu_custom_call.1} parent=1 // pred_fallthru
      _
    // Predicated region
    $region14: #{tpu_custom_call.1} parent=1 // pred_check
      _
    $region15: #{tpu_custom_call.1} parent=1 // pred_check_branch
      %38 = sbr.rel (0) target = $region17
    $region16: #{tpu_custom_call.1} parent=1 // pred_region
      _
    $region17: #{tpu_custom_call.1} parent=1 // pred_fallthru
      _
    // Predicated region
    $region18: #{tpu_custom_call.1} parent=1 // pred_check
      _
    $region19: #{tpu_custom_call.1} parent=1 // pred_check_branch
      %40 = sbr.rel (0) target = $region21
    $region20: #{tpu_custom_call.1} parent=1 // pred_region
      _
    $region21: #{tpu_custom_call.1} parent=1 // pred_fallthru
      _
    // Predicated region
    $region22: #{tpu_custom_call.1} parent=1 // pred_check
      _
    $region23: #{tpu_custom_call.1} parent=1 // pred_check_branch
      %42 = sbr.rel (0) target = $region25
    $region24: #{tpu_custom_call.1} parent=1 // pred_region
      _
    $region25: #{tpu_custom_call.1} parent=1 // pred_fallthru
      _
    // Predicated region
    $region26: #{tpu_custom_call.1} parent=1 // pred_check
      _
    $region27: #{tpu_custom_call.1} parent=1 // pred_check_branch
      %44 = sbr.rel (0) target = $region29
    $region28: #{tpu_custom_call.1} parent=1 // pred_region
      _
    $region29: #{tpu_custom_call.1} parent=1 // pred_fallthru
      _
    // Predicated region
    $region30: #{tpu_custom_call.1} parent=1 // pred_check
      _
    $region31: #{tpu_custom_call.1} parent=1 // pred_check_branch
      %46 = sbr.rel (0) target = $region33
    $region32: #{tpu_custom_call.1} parent=1 // pred_region
      %s48 = ssub.s32 16, 16
      %49 = vsyncadd [#allocation7], %s48
      %s51 = sshll.u32 [#allocation6], 4
      %s52 = int_to_ptr.vmem [resolvable:$true] %s51
      %54 = dma.hbm_to_vmem [thread:$0]  %s7, 16, %s52, [#allocation7]
    $region33: #{tpu_custom_call.1} parent=1 // pred_fallthru
      _
    // Predicated region
    $region34: #{tpu_custom_call.1} parent=1 // pred_check
      _
    $region35: #{tpu_custom_call.1} parent=1 // pred_check_branch
      %56 = sbr.rel (0) target = $region37
    $region36: #{tpu_custom_call.1} parent=1 // pred_region
      _
    $region37: #{tpu_custom_call.1} parent=1 // pred_fallthru
      _
    // Predicated region
    $region38: #{tpu_custom_call.1} parent=1 // pred_check
      _
    $region39: #{tpu_custom_call.1} parent=1 // pred_check_branch
      %58 = sbr.rel (0) target = $region41
    $region40: #{tpu_custom_call.1} parent=1 // pred_region
      _
    $region41: #{tpu_custom_call.1} parent=1 // pred_fallthru
      _
    // Predicated region
    $region42: #{tpu_custom_call.1} parent=1 // pred_check
      _
    $region43: #{tpu_custom_call.1} parent=1 // pred_check_branch
      %60 = sbr.rel (0) target = $region45
    $region44: #{tpu_custom_call.1} parent=1 // pred_region
      _
    $region45: #{tpu_custom_call.1} parent=1 // pred_fallthru
      _
    // Predicated region
    $region46: #{tpu_custom_call.1} parent=1 // pred_check
      _
    $region47: #{tpu_custom_call.1} parent=1 // pred_check_branch
      %62 = sbr.rel (0) target = $region49
    $region48: #{tpu_custom_call.1} parent=1 // pred_region
      %s64 = ssub.s32 256, 256
      %65 = vsyncadd [#allocation7], %s64
      %s66 = sshll.u32 [#allocation8], 4
      %s67 = int_to_ptr.vmem [resolvable:$true] %s66
      %72 = dma.hbm_to_vmem [thread:$0]  %s11, 256, %s67, [#allocation7], 64, 64, 4
    $region49: #{tpu_custom_call.1} parent=1 // pred_fallthru
      _
    // Predicated region
    $region50: #{tpu_custom_call.1} parent=1 // pred_check
      _
    $region51: #{tpu_custom_call.1} parent=1 // pred_check_branch
      %74 = sbr.rel (0) target = $region53
    $region52: #{tpu_custom_call.1} parent=1 // pred_region
      _
    $region53: #{tpu_custom_call.1} parent=1 // pred_fallthru
      _
    // Predicated region
    $region54: #{tpu_custom_call.1} parent=1 // pred_check
      _
    $region55: #{tpu_custom_call.1} parent=1 // pred_check_branch
      %76 = sbr.rel (0) target = $region57
    $region56: #{tpu_custom_call.1} parent=1 // pred_region
      %77 = dma.done [#allocation4], 64
    $region57: #{tpu_custom_call.1} parent=1 // pred_fallthru
      _
    // Predicated region
    $region58: #{tpu_custom_call.1} parent=1 // pred_check
      _
    $region59: #{tpu_custom_call.1} parent=1 // pred_check_branch
      %79 = sbr.rel (0) target = $region61
    $region60: #{tpu_custom_call.1} parent=1 // pred_region
      %80 = dma.done [#allocation7], 16
    $region61: #{tpu_custom_call.1} parent=1 // pred_fallthru
      _
    // Predicated region
    $region62: #{tpu_custom_call.1} parent=1 // pred_check
      _
    $region63: #{tpu_custom_call.1} parent=1 // pred_check_branch
      %82 = sbr.rel (0) target = $region65
    $region64: #{tpu_custom_call.1} parent=1 // pred_region
      %83 = dma.done [#allocation7], 256
    $region65: #{tpu_custom_call.1} parent=1 // pred_fallthru
      _
    %v85 = vld [vmem:[%s0] sm:$0xf]
    %v86 = vld [vmem:[%s0 + $0x4] sm:$0xf]
    %v87 = vld [vmem:[%s0 + $0x8] sm:$0xf]
    %v88 = vld [vmem:[%s0 + $0xc] sm:$0xf]
    %v89 = vld [vmem:[%s0 + $0x10] sm:$0xf]
    %v90 = vld [vmem:[%s0 + $0x14] sm:$0xf]
    %v91 = vld [vmem:[%s0 + $0x18] sm:$0xf]
    %v92 = vld [vmem:[%s0 + $0x1c] sm:$0xf]
    %v93 = vld [vmem:[#allocation3] sm:$0xf]
    %v94 = vld [vmem:[%s3] sm:$0x1]
    %v96 = vlaneseq
    %v97 = vshrl.u32 %v96, 7
    %v98 = vsub.s32 0, %v97
    %v99 = vrot.slane %v94, %v98
    %v109 = vunpack.c.l.b16 %v85
    %v110 = vunpack.c.l.b16 %v86
    %v111 = vunpack.c.l.b16 %v87
    %v112 = vunpack.c.l.b16 %v88
    %v113 = vunpack.c.l.b16 %v89
    %v114 = vunpack.c.l.b16 %v90
    %v115 = vunpack.c.l.b16 %v91
    %v116 = vunpack.c.l.b16 %v92
    %v117 = vpack.c.b16 %v110, %v109
    %v118 = vpack.c.b16 %v112, %v111
    %v119 = vpack.c.b16 %v114, %v113
    %v120 = vpack.c.b16 %v116, %v115
    %vm121 = vcmask 64512
    %v123 = vsel %vm121, %v117, 0
    %v126 = vsel %vm121, %v118, 0
    %v129 = vsel %vm121, %v119, 0
    %v132 = vsel %vm121, %v120, 0
    %vm134 = vcmask 1043456
    %v136 = vsel %vm134, %v93, 0
    %138 = vmatprep.subr.bf16.mxu0 0
    %139 = vmatpush1.bf16.msra.mxu0 %v136
    %140 = vmatprep.subr.bf16.mxu0 0
    %141 = vmatpush1.bf16.msra.mxu0 0
    %142 = vmatprep.subr.bf16.mxu0 0
    %143 = vmatpush1.bf16.msra.mxu0 0
    %144 = vmatprep.subr.bf16.mxu0 0
    %145 = vmatpush1.bf16.msra.mxu0 0
    %146 = vmatprep.subr.bf16.mxu0 0
    %147 = vmatpush1.bf16.msra.mxu0 0
    %148 = vmatprep.subr.bf16.mxu0 0
    %149 = vmatpush1.bf16.msra.mxu0 0
    %150 = vmatprep.subr.bf16.mxu0 0
    %151 = vmatpush1.bf16.msra.mxu0 0
    %152 = vmatprep.subr.bf16.mxu0 0
    %153 = vmatpush1.bf16.msra.mxu0 0
    %154 = vmatprep.subr.bf16.mxu0 0
    %155 = vmatpush1.bf16.msra.mxu0 0
    %156 = vmatprep.subr.bf16.mxu0 0
    %157 = vmatpush1.bf16.msra.mxu0 0
    %158 = vmatprep.subr.bf16.mxu0 0
    %159 = vmatpush1.bf16.msra.mxu0 0
    %160 = vmatprep.subr.bf16.mxu0 0
    %161 = vmatpush1.bf16.msra.mxu0 0
    %162 = vmatprep.subr.bf16.mxu0 0
    %163 = vmatpush1.bf16.msra.mxu0 0
    %164 = vmatprep.subr.bf16.mxu0 0
    %165 = vmatpush1.bf16.msra.mxu0 0
    %166 = vmatprep.subr.bf16.mxu0 0
    %167 = vmatpush1.bf16.msra.mxu0 0
    %168 = vmatprep.subr.bf16.mxu0 0
    %169 = vmatpush1.bf16.msra.mxu0 0
    %170 = vmatprep.mubr.bf16.mxu0 0
    %171 = vmatmul.mubr.bf16.gmra.mrb[0].mxu0 %v123
    %v172 = vpop.f32.mrb[0].mxu0
    %v173 = vadd.f32 %v99, %v172
    %v174 = vpop.f32.mrb[0].mxu0
    %v175 = vpop.f32.mrb[0].mxu0
    %v176 = vadd.f32 %v99, %v175
    %v177 = vpop.f32.mrb[0].mxu0
    %178 = vmatprep.mubr.bf16.mxu0 0
    %179 = vmatmul.mubr.bf16.gmra.mrb[0].mxu0 %v126
    %v180 = vpop.f32.mrb[0].mxu0
    %v181 = vadd.f32 %v99, %v180
    %v182 = vpop.f32.mrb[0].mxu0
    %v183 = vpop.f32.mrb[0].mxu0
    %v184 = vadd.f32 %v99, %v183
    %v185 = vpop.f32.mrb[0].mxu0
    %186 = vmatprep.mubr.bf16.mxu0 0
    %187 = vmatmul.mubr.bf16.gmra.mrb[0].mxu0 %v129
    %v188 = vpop.f32.mrb[0].mxu0
    %v189 = vadd.f32 %v99, %v188
    %v190 = vpop.f32.mrb[0].mxu0
    %v191 = vpop.f32.mrb[0].mxu0
    %v192 = vadd.f32 %v99, %v191
    %v193 = vpop.f32.mrb[0].mxu0
    %194 = vmatprep.mubr.bf16.mxu0 0
    %195 = vmatmul.mubr.bf16.gmra.mrb[0].mxu0 %v132
    %v196 = vpop.f32.mrb[0].mxu0
    %v197 = vadd.f32 %v99, %v196
    %v198 = vpop.f32.mrb[0].mxu0
    %v199 = vpop.f32.mrb[0].mxu0
    %v200 = vadd.f32 %v99, %v199
    %v201 = vpop.f32.mrb[0].mxu0
    %202 = vdwg.mxu0
    %v203 = vld [vmem:[%s2] sm:$0xf]
    %v204 = vld [vmem:[%s2 + $0x4] sm:$0xf]
    %v205 = vld [vmem:[%s2 + $0x8] sm:$0xf]
    %v206 = vld [vmem:[%s2 + $0xc] sm:$0xf]
    %v211 = vunpack.c.l.b16 %v203
    %v212 = vunpack.c.l.b16 %v204
    %v213 = vunpack.c.l.b16 %v205
    %v214 = vunpack.c.l.b16 %v206
    %v215 = vpack.c.b16 %v212, %v211
    %v216 = vpack.c.b16 %v214, %v213
    %vm219 = vcmask 261120
    %v221 = vsel %vm219, 0, 0
    %223 = vmatprep.subr.bf16.mxu0 0
    %224 = vmatpush1.bf16.msra.mxu0 %v215
    %225 = vmatprep.subr.bf16.mxu0 0
    %226 = vmatpush1.bf16.msra.mxu0 %v216
    %227 = vmatprep.subr.bf16.mxu0 0
    %228 = vmatpush1.bf16.msra.mxu0 0
    %229 = vmatprep.subr.bf16.mxu0 0
    %230 = vmatpush1.bf16.msra.mxu0 0
    %231 = vmatprep.subr.bf16.mxu0 0
    %232 = vmatpush1.bf16.msra.mxu0 0
    %233 = vmatprep.subr.bf16.mxu0 0
    %234 = vmatpush1.bf16.msra.mxu0 0
    %235 = vmatprep.subr.bf16.mxu0 0
    %236 = vmatpush1.bf16.msra.mxu0 0
    %237 = vmatprep.subr.bf16.mxu0 0
    %238 = vmatpush1.bf16.msra.mxu0 0
    %239 = vmatprep.subr.bf16.mxu0 0
    %240 = vmatpush1.bf16.msra.mxu0 0
    %241 = vmatprep.subr.bf16.mxu0 0
    %242 = vmatpush1.bf16.msra.mxu0 0
    %243 = vmatprep.subr.bf16.mxu0 0
    %244 = vmatpush1.bf16.msra.mxu0 0
    %245 = vmatprep.subr.bf16.mxu0 0
    %246 = vmatpush1.bf16.msra.mxu0 0
    %247 = vmatprep.subr.bf16.mxu0 0
    %248 = vmatpush1.bf16.msra.mxu0 0
    %249 = vmatprep.subr.bf16.mxu0 0
    %250 = vmatpush1.bf16.msra.mxu0 0
    %251 = vmatprep.subr.bf16.mxu0 0
    %252 = vmatpush1.bf16.msra.mxu0 0
    %253 = vmatprep.subr.bf16.mxu0 0
    %254 = vmatpush1.bf16.msra.mxu0 0
    %255 = vmatprep.mubr.bf16.mxu0 0
    %256 = vmatmul.mubr.bf16.gmra.mrb[0].mxu0 %v221
    %v257 = vpop.f32.mrb[0].mxu0
    %v258 = vadd.f32 0.0, %v257
    %v259 = vpop.f32.mrb[0].mxu0
    %v260 = vpop.f32.mrb[0].mxu0
    %v261 = vpop.f32.mrb[0].mxu0
    %262 = vdwg.mxu0
    %v263 = vadd.f32 %v173, %v258
    %v264 = vmul.f32 %v263, 0.5
    %v265 = vtanh.pop %v264
    %v266 = vadd.f32 %v265, 1.0
    %v267 = vmul.f32 %v266, 0.5
    %v268 = vtanh.pop %v263
    %v269 = vmul.f32 %v267, 0.0
    %271 = vrot.lane.b32.xlu0 %v268, 32
    %v272 = vpop.permute.xlu0 %271
    %v274 = vmul.f32 %v267, %v272
    %276 = vrot.lane.b32.xlu0 %v274, 32
    %v277 = vpop.permute.xlu0 %276
    %v279 = vadd.f32 %v269, %v277
    %v280 = vtanh.pop %v279
    %282 = vrot.lane.b32.xlu0 %v280, 32
    %v283 = vpop.permute.xlu0 %282
    %v285 = vmul.f32 %v267, %v283
    %v286 = vpack.c.bf16 %v285, %v285
    %288 = vrot.lane.b32.xlu0 %v286, 64
    %v289 = vpop.permute.xlu0 %288
    %v291 = vsel %vm219, %v289, 0
    %293 = vmatprep.subr.bf16.mxu0 0
    %294 = vmatpush1.bf16.msra.mxu0 %v215
    %295 = vmatprep.subr.bf16.mxu0 0
    %296 = vmatpush1.bf16.msra.mxu0 %v216
    %297 = vmatprep.subr.bf16.mxu0 0
    %298 = vmatpush1.bf16.msra.mxu0 0
    %299 = vmatprep.subr.bf16.mxu0 0
    %300 = vmatpush1.bf16.msra.mxu0 0
    %301 = vmatprep.subr.bf16.mxu0 0
    %302 = vmatpush1.bf16.msra.mxu0 0
    %303 = vmatprep.subr.bf16.mxu0 0
    %304 = vmatpush1.bf16.msra.mxu0 0
    %305 = vmatprep.subr.bf16.mxu0 0
    %306 = vmatpush1.bf16.msra.mxu0 0
    %307 = vmatprep.subr.bf16.mxu0 0
    %308 = vmatpush1.bf16.msra.mxu0 0
    %309 = vmatprep.subr.bf16.mxu0 0
    %310 = vmatpush1.bf16.msra.mxu0 0
    %311 = vmatprep.subr.bf16.mxu0 0
    %312 = vmatpush1.bf16.msra.mxu0 0
    %313 = vmatprep.subr.bf16.mxu0 0
    %314 = vmatpush1.bf16.msra.mxu0 0
    %315 = vmatprep.subr.bf16.mxu0 0
    %316 = vmatpush1.bf16.msra.mxu0 0
    %317 = vmatprep.subr.bf16.mxu0 0
    %318 = vmatpush1.bf16.msra.mxu0 0
    %319 = vmatprep.subr.bf16.mxu0 0
    %320 = vmatpush1.bf16.msra.mxu0 0
    %321 = vmatprep.subr.bf16.mxu0 0
    %322 = vmatpush1.bf16.msra.mxu0 0
    %323 = vmatprep.subr.bf16.mxu0 0
    %324 = vmatpush1.bf16.msra.mxu0 0
    %325 = vmatprep.mubr.bf16.mxu0 0
    %326 = vmatmul.mubr.bf16.gmra.mrb[0].mxu0 %v291
    %v327 = vpop.f32.mrb[0].mxu0
    %v328 = vadd.f32 0.0, %v327
    %v329 = vpop.f32.mrb[0].mxu0
    %v330 = vpop.f32.mrb[0].mxu0
    %v331 = vpop.f32.mrb[0].mxu0
    %332 = vdwg.mxu0
    %v333 = vadd.f32 %v176, %v328
    %v334 = vmul.f32 %v333, 0.5
    %v335 = vtanh.pop %v334
    %v336 = vadd.f32 %v335, 1.0
    %v337 = vmul.f32 %v336, 0.5
    %v338 = vtanh.pop %v333
    %v339 = vmul.f32 %v337, %v279
    %341 = vrot.lane.b32.xlu0 %v338, 32
    %v342 = vpop.permute.xlu0 %341
    %v344 = vmul.f32 %v337, %v342
    %346 = vrot.lane.b32.xlu0 %v344, 32
    %v347 = vpop.permute.xlu0 %346
    %v349 = vadd.f32 %v339, %v347
    %v350 = vtanh.pop %v349
    %352 = vrot.lane.b32.xlu0 %v350, 32
    %v353 = vpop.permute.xlu0 %352
    %v355 = vmul.f32 %v337, %v353
    %v356 = vpack.c.bf16 %v355, %v355
    %358 = vrot.lane.b32.xlu0 %v356, 64
    %v359 = vpop.permute.xlu0 %358
    %v361 = vsel %vm219, %v359, 0
    %363 = vmatprep.subr.bf16.mxu0 0
    %364 = vmatpush1.bf16.msra.mxu0 %v215
    %365 = vmatprep.subr.bf16.mxu0 0
    %366 = vmatpush1.bf16.msra.mxu0 %v216
    %367 = vmatprep.subr.bf16.mxu0 0
    %368 = vmatpush1.bf16.msra.mxu0 0
    %369 = vmatprep.subr.bf16.mxu0 0
    %370 = vmatpush1.bf16.msra.mxu0 0
    %371 = vmatprep.subr.bf16.mxu0 0
    %372 = vmatpush1.bf16.msra.mxu0 0
    %373 = vmatprep.subr.bf16.mxu0 0
    %374 = vmatpush1.bf16.msra.mxu0 0
    %375 = vmatprep.subr.bf16.mxu0 0
    %376 = vmatpush1.bf16.msra.mxu0 0
    %377 = vmatprep.subr.bf16.mxu0 0
    %378 = vmatpush1.bf16.msra.mxu0 0
    %379 = vmatprep.subr.bf16.mxu0 0
    %380 = vmatpush1.bf16.msra.mxu0 0
    %381 = vmatprep.subr.bf16.mxu0 0
    %382 = vmatpush1.bf16.msra.mxu0 0
    %383 = vmatprep.subr.bf16.mxu0 0
    %384 = vmatpush1.bf16.msra.mxu0 0
    %385 = vmatprep.subr.bf16.mxu0 0
    %386 = vmatpush1.bf16.msra.mxu0 0
    %387 = vmatprep.subr.bf16.mxu0 0
    %388 = vmatpush1.bf16.msra.mxu0 0
    %389 = vmatprep.subr.bf16.mxu0 0
    %390 = vmatpush1.bf16.msra.mxu0 0
    %391 = vmatprep.subr.bf16.mxu0 0
    %392 = vmatpush1.bf16.msra.mxu0 0
    %393 = vmatprep.subr.bf16.mxu0 0
    %394 = vmatpush1.bf16.msra.mxu0 0
    %395 = vmatprep.mubr.bf16.mxu0 0
    %396 = vmatmul.mubr.bf16.gmra.mrb[0].mxu0 %v361
    %v397 = vpop.f32.mrb[0].mxu0
    %v398 = vadd.f32 0.0, %v397
    %v399 = vpop.f32.mrb[0].mxu0
    %v400 = vpop.f32.mrb[0].mxu0
    %v401 = vpop.f32.mrb[0].mxu0
    %402 = vdwg.mxu0
    %v403 = vadd.f32 %v181, %v398
    %v404 = vmul.f32 %v403, 0.5
    %v405 = vtanh.pop %v404
    %v406 = vadd.f32 %v405, 1.0
    %v407 = vmul.f32 %v406, 0.5
    %v408 = vtanh.pop %v403
    %v409 = vmul.f32 %v407, %v349
    %411 = vrot.lane.b32.xlu0 %v408, 32
    %v412 = vpop.permute.xlu0 %411
    %v414 = vmul.f32 %v407, %v412
    %416 = vrot.lane.b32.xlu0 %v414, 32
    %v417 = vpop.permute.xlu0 %416
    %v419 = vadd.f32 %v409, %v417
    %v420 = vtanh.pop %v419
    %422 = vrot.lane.b32.xlu0 %v420, 32
    %v423 = vpop.permute.xlu0 %422
    %v425 = vmul.f32 %v407, %v423
    %v426 = vpack.c.bf16 %v425, %v425
    %428 = vrot.lane.b32.xlu0 %v426, 64
    %v429 = vpop.permute.xlu0 %428
    %v431 = vsel %vm219, %v429, 0
    %433 = vmatprep.subr.bf16.mxu0 0
    %434 = vmatpush1.bf16.msra.mxu0 %v215
    %435 = vmatprep.subr.bf16.mxu0 0
    %436 = vmatpush1.bf16.msra.mxu0 %v216
    %437 = vmatprep.subr.bf16.mxu0 0
    %438 = vmatpush1.bf16.msra.mxu0 0
    %439 = vmatprep.subr.bf16.mxu0 0
    %440 = vmatpush1.bf16.msra.mxu0 0
    %441 = vmatprep.subr.bf16.mxu0 0
    %442 = vmatpush1.bf16.msra.mxu0 0
    %443 = vmatprep.subr.bf16.mxu0 0
    %444 = vmatpush1.bf16.msra.mxu0 0
    %445 = vmatprep.subr.bf16.mxu0 0
    %446 = vmatpush1.bf16.msra.mxu0 0
    %447 = vmatprep.subr.bf16.mxu0 0
    %448 = vmatpush1.bf16.msra.mxu0 0
    %449 = vmatprep.subr.bf16.mxu0 0
    %450 = vmatpush1.bf16.msra.mxu0 0
    %451 = vmatprep.subr.bf16.mxu0 0
    %452 = vmatpush1.bf16.msra.mxu0 0
    %453 = vmatprep.subr.bf16.mxu0 0
    %454 = vmatpush1.bf16.msra.mxu0 0
    %455 = vmatprep.subr.bf16.mxu0 0
    %456 = vmatpush1.bf16.msra.mxu0 0
    %457 = vmatprep.subr.bf16.mxu0 0
    %458 = vmatpush1.bf16.msra.mxu0 0
    %459 = vmatprep.subr.bf16.mxu0 0
    %460 = vmatpush1.bf16.msra.mxu0 0
    %461 = vmatprep.subr.bf16.mxu0 0
    %462 = vmatpush1.bf16.msra.mxu0 0
    %463 = vmatprep.subr.bf16.mxu0 0
    %464 = vmatpush1.bf16.msra.mxu0 0
    %465 = vmatprep.mubr.bf16.mxu0 0
    %466 = vmatmul.mubr.bf16.gmra.mrb[0].mxu0 %v431
    %v467 = vpop.f32.mrb[0].mxu0
    %v468 = vadd.f32 0.0, %v467
    %v469 = vpop.f32.mrb[0].mxu0
    %v470 = vpop.f32.mrb[0].mxu0
    %v471 = vpop.f32.mrb[0].mxu0
    %472 = vdwg.mxu0
    %v473 = vadd.f32 %v184, %v468
    %v474 = vmul.f32 %v473, 0.5
    %v475 = vtanh.pop %v474
    %v476 = vadd.f32 %v475, 1.0
    %v477 = vmul.f32 %v476, 0.5
    %v478 = vtanh.pop %v473
    %v479 = vmul.f32 %v477, %v419
    %481 = vrot.lane.b32.xlu0 %v478, 32
    %v482 = vpop.permute.xlu0 %481
    %v484 = vmul.f32 %v477, %v482
    %486 = vrot.lane.b32.xlu0 %v484, 32
    %v487 = vpop.permute.xlu0 %486
    %v489 = vadd.f32 %v479, %v487
    %v490 = vtanh.pop %v489
    %492 = vrot.lane.b32.xlu0 %v490, 32
    %v493 = vpop.permute.xlu0 %492
    %v495 = vmul.f32 %v477, %v493
    %v496 = vpack.c.bf16 %v495, %v495
    %498 = vrot.lane.b32.xlu0 %v496, 64
    %v499 = vpop.permute.xlu0 %498
    %v501 = vsel %vm219, %v499, 0
    %503 = vmatprep.subr.bf16.mxu0 0
    %504 = vmatpush1.bf16.msra.mxu0 %v215
    %505 = vmatprep.subr.bf16.mxu0 0
    %506 = vmatpush1.bf16.msra.mxu0 %v216
    %507 = vmatprep.subr.bf16.mxu0 0
    %508 = vmatpush1.bf16.msra.mxu0 0
    %509 = vmatprep.subr.bf16.mxu0 0
    %510 = vmatpush1.bf16.msra.mxu0 0
    %511 = vmatprep.subr.bf16.mxu0 0
    %512 = vmatpush1.bf16.msra.mxu0 0
    %513 = vmatprep.subr.bf16.mxu0 0
    %514 = vmatpush1.bf16.msra.mxu0 0
    %515 = vmatprep.subr.bf16.mxu0 0
    %516 = vmatpush1.bf16.msra.mxu0 0
    %517 = vmatprep.subr.bf16.mxu0 0
    %518 = vmatpush1.bf16.msra.mxu0 0
    %519 = vmatprep.subr.bf16.mxu0 0
    %520 = vmatpush1.bf16.msra.mxu0 0
    %521 = vmatprep.subr.bf16.mxu0 0
    %522 = vmatpush1.bf16.msra.mxu0 0
    %523 = vmatprep.subr.bf16.mxu0 0
    %524 = vmatpush1.bf16.msra.mxu0 0
    %525 = vmatprep.subr.bf16.mxu0 0
    %526 = vmatpush1.bf16.msra.mxu0 0
    %527 = vmatprep.subr.bf16.mxu0 0
    %528 = vmatpush1.bf16.msra.mxu0 0
    %529 = vmatprep.subr.bf16.mxu0 0
    %530 = vmatpush1.bf16.msra.mxu0 0
    %531 = vmatprep.subr.bf16.mxu0 0
    %532 = vmatpush1.bf16.msra.mxu0 0
    %533 = vmatprep.subr.bf16.mxu0 0
    %534 = vmatpush1.bf16.msra.mxu0 0
    %535 = vmatprep.mubr.bf16.mxu0 0
    %536 = vmatmul.mubr.bf16.gmra.mrb[0].mxu0 %v501
    %v537 = vpop.f32.mrb[0].mxu0
    %v538 = vadd.f32 0.0, %v537
    %v539 = vpop.f32.mrb[0].mxu0
    %v540 = vpop.f32.mrb[0].mxu0
    %v541 = vpop.f32.mrb[0].mxu0
    %542 = vdwg.mxu0
    %v543 = vadd.f32 %v189, %v538
    %v544 = vmul.f32 %v543, 0.5
    %v545 = vtanh.pop %v544
    %v546 = vadd.f32 %v545, 1.0
    %v547 = vmul.f32 %v546, 0.5
    %v548 = vtanh.pop %v543
    %v549 = vmul.f32 %v547, %v489
    %551 = vrot.lane.b32.xlu0 %v548, 32
    %v552 = vpop.permute.xlu0 %551
    %v554 = vmul.f32 %v547, %v552
    %556 = vrot.lane.b32.xlu0 %v554, 32
    %v557 = vpop.permute.xlu0 %556
    %v559 = vadd.f32 %v549, %v557
    %v560 = vtanh.pop %v559
    %562 = vrot.lane.b32.xlu0 %v560, 32
    %v563 = vpop.permute.xlu0 %562
    %v565 = vmul.f32 %v547, %v563
    %v566 = vpack.c.bf16 %v565, %v565
    %568 = vrot.lane.b32.xlu0 %v566, 64
    %v569 = vpop.permute.xlu0 %568
    %v571 = vsel %vm219, %v569, 0
    %573 = vmatprep.subr.bf16.mxu0 0
    %574 = vmatpush1.bf16.msra.mxu0 %v215
    %575 = vmatprep.subr.bf16.mxu0 0
    %576 = vmatpush1.bf16.msra.mxu0 %v216
    %577 = vmatprep.subr.bf16.mxu0 0
    %578 = vmatpush1.bf16.msra.mxu0 0
    %579 = vmatprep.subr.bf16.mxu0 0
    %580 = vmatpush1.bf16.msra.mxu0 0
    %581 = vmatprep.subr.bf16.mxu0 0
    %582 = vmatpush1.bf16.msra.mxu0 0
    %583 = vmatprep.subr.bf16.mxu0 0
    %584 = vmatpush1.bf16.msra.mxu0 0
    %585 = vmatprep.subr.bf16.mxu0 0
    %586 = vmatpush1.bf16.msra.mxu0 0
    %587 = vmatprep.subr.bf16.mxu0 0
    %588 = vmatpush1.bf16.msra.mxu0 0
    %589 = vmatprep.subr.bf16.mxu0 0
    %590 = vmatpush1.bf16.msra.mxu0 0
    %591 = vmatprep.subr.bf16.mxu0 0
    %592 = vmatpush1.bf16.msra.mxu0 0
    %593 = vmatprep.subr.bf16.mxu0 0
    %594 = vmatpush1.bf16.msra.mxu0 0
    %595 = vmatprep.subr.bf16.mxu0 0
    %596 = vmatpush1.bf16.msra.mxu0 0
    %597 = vmatprep.subr.bf16.mxu0 0
    %598 = vmatpush1.bf16.msra.mxu0 0
    %599 = vmatprep.subr.bf16.mxu0 0
    %600 = vmatpush1.bf16.msra.mxu0 0
    %601 = vmatprep.subr.bf16.mxu0 0
    %602 = vmatpush1.bf16.msra.mxu0 0
    %603 = vmatprep.subr.bf16.mxu0 0
    %604 = vmatpush1.bf16.msra.mxu0 0
    %605 = vmatprep.mubr.bf16.mxu0 0
    %606 = vmatmul.mubr.bf16.gmra.mrb[0].mxu0 %v571
    %v607 = vpop.f32.mrb[0].mxu0
    %v608 = vadd.f32 0.0, %v607
    %v609 = vpop.f32.mrb[0].mxu0
    %v610 = vpop.f32.mrb[0].mxu0
    %v611 = vpop.f32.mrb[0].mxu0
    %612 = vdwg.mxu0
    %v613 = vadd.f32 %v192, %v608
    %v614 = vmul.f32 %v613, 0.5
    %v615 = vtanh.pop %v614
    %v616 = vadd.f32 %v615, 1.0
    %v617 = vmul.f32 %v616, 0.5
    %v618 = vtanh.pop %v613
    %v619 = vmul.f32 %v617, %v559
    %621 = vrot.lane.b32.xlu0 %v618, 32
    %v622 = vpop.permute.xlu0 %621
    %v624 = vmul.f32 %v617, %v622
    %626 = vrot.lane.b32.xlu0 %v624, 32
    %v627 = vpop.permute.xlu0 %626
    %v629 = vadd.f32 %v619, %v627
    %v630 = vtanh.pop %v629
    %632 = vrot.lane.b32.xlu0 %v630, 32
    %v633 = vpop.permute.xlu0 %632
    %v635 = vmul.f32 %v617, %v633
    %v636 = vpack.c.bf16 %v635, %v635
    %638 = vrot.lane.b32.xlu0 %v636, 64
    %v639 = vpop.permute.xlu0 %638
    %v641 = vsel %vm219, %v639, 0
    %643 = vmatprep.subr.bf16.mxu0 0
    %644 = vmatpush1.bf16.msra.mxu0 %v215
    %645 = vmatprep.subr.bf16.mxu0 0
    %646 = vmatpush1.bf16.msra.mxu0 %v216
    %647 = vmatprep.subr.bf16.mxu0 0
    %648 = vmatpush1.bf16.msra.mxu0 0
    %649 = vmatprep.subr.bf16.mxu0 0
    %650 = vmatpush1.bf16.msra.mxu0 0
    %651 = vmatprep.subr.bf16.mxu0 0
    %652 = vmatpush1.bf16.msra.mxu0 0
    %653 = vmatprep.subr.bf16.mxu0 0
    %654 = vmatpush1.bf16.msra.mxu0 0
    %655 = vmatprep.subr.bf16.mxu0 0
    %656 = vmatpush1.bf16.msra.mxu0 0
    %657 = vmatprep.subr.bf16.mxu0 0
    %658 = vmatpush1.bf16.msra.mxu0 0
    %659 = vmatprep.subr.bf16.mxu0 0
    %660 = vmatpush1.bf16.msra.mxu0 0
    %661 = vmatprep.subr.bf16.mxu0 0
    %662 = vmatpush1.bf16.msra.mxu0 0
    %663 = vmatprep.subr.bf16.mxu0 0
    %664 = vmatpush1.bf16.msra.mxu0 0
    %665 = vmatprep.subr.bf16.mxu0 0
    %666 = vmatpush1.bf16.msra.mxu0 0
    %667 = vmatprep.subr.bf16.mxu0 0
    %668 = vmatpush1.bf16.msra.mxu0 0
    %669 = vmatprep.subr.bf16.mxu0 0
    %670 = vmatpush1.bf16.msra.mxu0 0
    %671 = vmatprep.subr.bf16.mxu0 0
    %672 = vmatpush1.bf16.msra.mxu0 0
    %673 = vmatprep.subr.bf16.mxu0 0
    %674 = vmatpush1.bf16.msra.mxu0 0
    %675 = vmatprep.mubr.bf16.mxu0 0
    %676 = vmatmul.mubr.bf16.gmra.mrb[0].mxu0 %v641
    %v677 = vpop.f32.mrb[0].mxu0
    %v678 = vadd.f32 0.0, %v677
    %v679 = vpop.f32.mrb[0].mxu0
    %v680 = vpop.f32.mrb[0].mxu0
    %v681 = vpop.f32.mrb[0].mxu0
    %682 = vdwg.mxu0
    %v683 = vadd.f32 %v197, %v678
    %v684 = vmul.f32 %v683, 0.5
    %v685 = vtanh.pop %v684
    %v686 = vadd.f32 %v685, 1.0
    %v687 = vmul.f32 %v686, 0.5
    %v688 = vtanh.pop %v683
    %v689 = vmul.f32 %v687, %v629
    %691 = vrot.lane.b32.xlu0 %v688, 32
    %v692 = vpop.permute.xlu0 %691
    %v694 = vmul.f32 %v687, %v692
    %696 = vrot.lane.b32.xlu0 %v694, 32
    %v697 = vpop.permute.xlu0 %696
    %v699 = vadd.f32 %v689, %v697
    %v700 = vtanh.pop %v699
    %702 = vrot.lane.b32.xlu0 %v700, 32
    %v703 = vpop.permute.xlu0 %702
    %v705 = vmul.f32 %v687, %v703
    %v706 = vpack.c.bf16 %v705, %v705
    %708 = vrot.lane.b32.xlu0 %v706, 64
    %v709 = vpop.permute.xlu0 %708
    %v711 = vsel %vm219, %v709, 0
    %713 = vmatprep.subr.bf16.mxu0 0
    %714 = vmatpush1.bf16.msra.mxu0 %v215
    %715 = vmatprep.subr.bf16.mxu0 0
    %716 = vmatpush1.bf16.msra.mxu0 %v216
    %717 = vmatprep.subr.bf16.mxu0 0
    %718 = vmatpush1.bf16.msra.mxu0 0
    %719 = vmatprep.subr.bf16.mxu0 0
    %720 = vmatpush1.bf16.msra.mxu0 0
    %721 = vmatprep.subr.bf16.mxu0 0
    %722 = vmatpush1.bf16.msra.mxu0 0
    %723 = vmatprep.subr.bf16.mxu0 0
    %724 = vmatpush1.bf16.msra.mxu0 0
    %725 = vmatprep.subr.bf16.mxu0 0
    %726 = vmatpush1.bf16.msra.mxu0 0
    %727 = vmatprep.subr.bf16.mxu0 0
    %728 = vmatpush1.bf16.msra.mxu0 0
    %729 = vmatprep.subr.bf16.mxu0 0
    %730 = vmatpush1.bf16.msra.mxu0 0
    %731 = vmatprep.subr.bf16.mxu0 0
    %732 = vmatpush1.bf16.msra.mxu0 0
    %733 = vmatprep.subr.bf16.mxu0 0
    %734 = vmatpush1.bf16.msra.mxu0 0
    %735 = vmatprep.subr.bf16.mxu0 0
    %736 = vmatpush1.bf16.msra.mxu0 0
    %737 = vmatprep.subr.bf16.mxu0 0
    %738 = vmatpush1.bf16.msra.mxu0 0
    %739 = vmatprep.subr.bf16.mxu0 0
    %740 = vmatpush1.bf16.msra.mxu0 0
    %741 = vmatprep.subr.bf16.mxu0 0
    %742 = vmatpush1.bf16.msra.mxu0 0
    %743 = vmatprep.subr.bf16.mxu0 0
    %744 = vmatpush1.bf16.msra.mxu0 0
    %745 = vmatprep.mubr.bf16.mxu0 0
    %746 = vmatmul.mubr.bf16.gmra.mrb[0].mxu0 %v711
    %v747 = vpop.f32.mrb[0].mxu0
    %v748 = vadd.f32 0.0, %v747
    %v749 = vpop.f32.mrb[0].mxu0
    %v750 = vpop.f32.mrb[0].mxu0
    %v751 = vpop.f32.mrb[0].mxu0
    %752 = vdwg.mxu0
    %v753 = vadd.f32 %v200, %v748
    %v754 = vmul.f32 %v753, 0.5
    %v755 = vtanh.pop %v754
    %v756 = vadd.f32 %v755, 1.0
    %v757 = vmul.f32 %v756, 0.5
    %v758 = vtanh.pop %v753
    %v759 = vmul.f32 %v757, %v699
    %761 = vrot.lane.b32.xlu0 %v758, 32
    %v762 = vpop.permute.xlu0 %761
    %v764 = vmul.f32 %v757, %v762
    %766 = vrot.lane.b32.xlu0 %v764, 32
    %v767 = vpop.permute.xlu0 %766
    %v769 = vadd.f32 %v759, %v767
    %v770 = vtanh.pop %v769
    %772 = vrot.lane.b32.xlu0 %v770, 32
    %v773 = vpop.permute.xlu0 %772
    %v775 = vmul.f32 %v757, %v773
    %v776 = vpack.c.bf16 %v775, %v775
    %v777 = vrot.slane %v356, 4
    %v778 = vrot.slane %v496, 4
    %v779 = vrot.slane %v636, 4
    %v781 = vrot.slane %v776, 4
    %v784 = vsel %vm134, %v286, %v777
    %v787 = vsel %vm134, %v426, %v778
    %v790 = vsel %vm134, %v566, %v779
    %v793 = vsel %vm134, %v706, %v781
    %v794 = vld [vmem:[%s4] sm:$0xf]
    %v795 = vld [vmem:[%s4 + $0x4] sm:$0xf]
    %v796 = vld [vmem:[%s4 + $0x8] sm:$0xf]
    %v797 = vld [vmem:[%s4 + $0xc] sm:$0xf]
    %v798 = vld [vmem:[%s6] sm:$0x1]
    %v800 = vlaneseq
    %v801 = vshrl.u32 %v800, 7
    %v802 = vsub.s32 0, %v801
    %v803 = vrot.slane %v798, %v802
    %809 = vrot.lane.b32.xlu0 %v784, 64
    %v810 = vpop.permute.xlu0 %809
    %811 = vrot.lane.b32.xlu0 %v787, 64
    %v812 = vpop.permute.xlu0 %811
    %813 = vrot.lane.b32.xlu0 %v790, 64
    %v814 = vpop.permute.xlu0 %813
    %815 = vrot.lane.b32.xlu0 %v793, 64
    %v816 = vpop.permute.xlu0 %815
    %v821 = vunpack.c.l.b16 %v794
    %v822 = vunpack.c.l.b16 %v795
    %v823 = vunpack.c.l.b16 %v796
    %v824 = vunpack.c.l.b16 %v797
    %v825 = vpack.c.b16 %v822, %v821
    %v826 = vpack.c.b16 %v824, %v823
    %v830 = vsel %vm219, %v810, 0
    %v833 = vsel %vm219, %v812, 0
    %v836 = vsel %vm219, %v814, 0
    %v839 = vsel %vm219, %v816, 0
    %841 = vmatprep.subr.bf16.mxu0 0
    %842 = vmatpush1.bf16.msra.mxu0 %v825
    %843 = vmatprep.subr.bf16.mxu0 0
    %844 = vmatpush1.bf16.msra.mxu0 %v826
    %845 = vmatprep.subr.bf16.mxu0 0
    %846 = vmatpush1.bf16.msra.mxu0 0
    %847 = vmatprep.subr.bf16.mxu0 0
    %848 = vmatpush1.bf16.msra.mxu0 0
    %849 = vmatprep.subr.bf16.mxu0 0
    %850 = vmatpush1.bf16.msra.mxu0 0
    %851 = vmatprep.subr.bf16.mxu0 0
    %852 = vmatpush1.bf16.msra.mxu0 0
    %853 = vmatprep.subr.bf16.mxu0 0
    %854 = vmatpush1.bf16.msra.mxu0 0
    %855 = vmatprep.subr.bf16.mxu0 0
    %856 = vmatpush1.bf16.msra.mxu0 0
    %857 = vmatprep.subr.bf16.mxu0 0
    %858 = vmatpush1.bf16.msra.mxu0 0
    %859 = vmatprep.subr.bf16.mxu0 0
    %860 = vmatpush1.bf16.msra.mxu0 0
    %861 = vmatprep.subr.bf16.mxu0 0
    %862 = vmatpush1.bf16.msra.mxu0 0
    %863 = vmatprep.subr.bf16.mxu0 0
    %864 = vmatpush1.bf16.msra.mxu0 0
    %865 = vmatprep.subr.bf16.mxu0 0
    %866 = vmatpush1.bf16.msra.mxu0 0
    %867 = vmatprep.subr.bf16.mxu0 0
    %868 = vmatpush1.bf16.msra.mxu0 0
    %869 = vmatprep.subr.bf16.mxu0 0
    %870 = vmatpush1.bf16.msra.mxu0 0
    %871 = vmatprep.subr.bf16.mxu0 0
    %872 = vmatpush1.bf16.msra.mxu0 0
    %873 = vmatprep.mubr.bf16.mxu0 0
    %874 = vmatmul.mubr.bf16.gmra.mrb[0].mxu0 %v830
    %v875 = vpop.f32.mrb[0].mxu0
    %v876 = vadd.f32 %v803, %v875
    %v877 = vpop.f32.mrb[0].mxu0
    %v878 = vpop.f32.mrb[0].mxu0
    %v879 = vadd.f32 %v803, %v878
    %v880 = vpop.f32.mrb[0].mxu0
    %881 = vmatprep.mubr.bf16.mxu0 0
    %882 = vmatmul.mubr.bf16.gmra.mrb[0].mxu0 %v833
    %v883 = vpop.f32.mrb[0].mxu0
    %v884 = vadd.f32 %v803, %v883
    %v885 = vpop.f32.mrb[0].mxu0
    %v886 = vpop.f32.mrb[0].mxu0
    %v887 = vadd.f32 %v803, %v886
    %v888 = vpop.f32.mrb[0].mxu0
    %889 = vmatprep.mubr.bf16.mxu0 0
    %890 = vmatmul.mubr.bf16.gmra.mrb[0].mxu0 %v836
    %v891 = vpop.f32.mrb[0].mxu0
    %v892 = vadd.f32 %v803, %v891
    %v893 = vpop.f32.mrb[0].mxu0
    %v894 = vpop.f32.mrb[0].mxu0
    %v895 = vadd.f32 %v803, %v894
    %v896 = vpop.f32.mrb[0].mxu0
    %897 = vmatprep.mubr.bf16.mxu0 0
    %898 = vmatmul.mubr.bf16.gmra.mrb[0].mxu0 %v839
    %v899 = vpop.f32.mrb[0].mxu0
    %v900 = vadd.f32 %v803, %v899
    %v901 = vpop.f32.mrb[0].mxu0
    %v902 = vpop.f32.mrb[0].mxu0
    %v903 = vadd.f32 %v803, %v902
    %v904 = vpop.f32.mrb[0].mxu0
    %905 = vdwg.mxu0
    %v906 = vld [vmem:[%s5] sm:$0xf]
    %v907 = vld [vmem:[%s5 + $0x4] sm:$0xf]
    %v908 = vld [vmem:[%s5 + $0x8] sm:$0xf]
    %v909 = vld [vmem:[%s5 + $0xc] sm:$0xf]
    %v910 = vld [vmem:[#allocation6] sm:$0x1]
    %v911 = vld [vmem:[#allocation2] sm:$0x1]
    %v916 = vunpack.c.l.b16 %v906
    %v917 = vunpack.c.l.b16 %v907
    %v918 = vunpack.c.l.b16 %v908
    %v919 = vunpack.c.l.b16 %v909
    %v920 = vpack.c.b16 %v917, %v916
    %v921 = vpack.c.b16 %v919, %v918
    %924 = vmatprep.subr.bf16.mxu0 0
    %925 = vmatpush1.bf16.msra.mxu0 %v920
    %926 = vmatprep.subr.bf16.mxu0 0
    %927 = vmatpush1.bf16.msra.mxu0 %v921
    %928 = vmatprep.subr.bf16.mxu0 0
    %929 = vmatpush1.bf16.msra.mxu0 0
    %930 = vmatprep.subr.bf16.mxu0 0
    %931 = vmatpush1.bf16.msra.mxu0 0
    %932 = vmatprep.subr.bf16.mxu0 0
    %933 = vmatpush1.bf16.msra.mxu0 0
    %934 = vmatprep.subr.bf16.mxu0 0
    %935 = vmatpush1.bf16.msra.mxu0 0
    %936 = vmatprep.subr.bf16.mxu0 0
    %937 = vmatpush1.bf16.msra.mxu0 0
    %938 = vmatprep.subr.bf16.mxu0 0
    %939 = vmatpush1.bf16.msra.mxu0 0
    %940 = vmatprep.subr.bf16.mxu0 0
    %941 = vmatpush1.bf16.msra.mxu0 0
    %942 = vmatprep.subr.bf16.mxu0 0
    %943 = vmatpush1.bf16.msra.mxu0 0
    %944 = vmatprep.subr.bf16.mxu0 0
    %945 = vmatpush1.bf16.msra.mxu0 0
    %946 = vmatprep.subr.bf16.mxu0 0
    %947 = vmatpush1.bf16.msra.mxu0 0
    %948 = vmatprep.subr.bf16.mxu0 0
    %949 = vmatpush1.bf16.msra.mxu0 0
    %950 = vmatprep.subr.bf16.mxu0 0
    %951 = vmatpush1.bf16.msra.mxu0 0
    %952 = vmatprep.subr.bf16.mxu0 0
    %953 = vmatpush1.bf16.msra.mxu0 0
    %954 = vmatprep.subr.bf16.mxu0 0
    %955 = vmatpush1.bf16.msra.mxu0 0
    %956 = vmatprep.mubr.bf16.mxu0 0
    %957 = vmatmul.mubr.bf16.gmra.mrb[0].mxu0 %v221
    %v958 = vpop.f32.mrb[0].mxu0
    %v959 = vadd.f32 0.0, %v958
    %v960 = vpop.f32.mrb[0].mxu0
    %v961 = vpop.f32.mrb[0].mxu0
    %v962 = vpop.f32.mrb[0].mxu0
    %963 = vdwg.mxu0
    %v964 = vadd.f32 %v876, %v959
    %v965 = vmul.f32 %v964, 0.5
    %v966 = vtanh.pop %v965
    %v967 = vadd.f32 %v966, 1.0
    %v968 = vmul.f32 %v967, 0.5
    %v969 = vtanh.pop %v964
    %v970 = vmul.f32 %v968, 0.0
    %972 = vrot.lane.b32.xlu0 %v969, 32
    %v973 = vpop.permute.xlu0 %972
    %v975 = vmul.f32 %v968, %v973
    %977 = vrot.lane.b32.xlu0 %v975, 32
    %v978 = vpop.permute.xlu0 %977
    %v980 = vadd.f32 %v970, %v978
    %v981 = vtanh.pop %v980
    %983 = vrot.lane.b32.xlu0 %v981, 32
    %v984 = vpop.permute.xlu0 %983
    %v986 = vmul.f32 %v968, %v984
    %v987 = vpack.c.bf16 %v986, %v986
    %v989 = vlaneseq
    %v990 = vshrl.u32 %v989, 7
    %v991 = vsub.s32 0, %v990
    %v992 = vrot.slane %v910, %v991
    %993 = vrot.lane.b32.xlu0 %v992, 64
    %v994 = vpop.permute.xlu0 %993
    %v996 = vmul.f32 %v986, %v994
    %998 = vrot.lane.b32.xlu0 %v996, 64
    %v999 = vpop.permute.xlu0 %998
    %v1001 = vsel %vm219, %v999, 0.0
    %1002 = vadd.xlane.f32.xlu0 %v1001
    %v1003 = vpop.xlane.xlu0 %1002
    %v1005 = vlaneseq
    %v1006 = vshrl.u32 %v1005, 7
    %v1007 = vsub.s32 0, %v1006
    %v1008 = vrot.slane %v911, %v1007
    %v1010 = vadd.f32 %v1003, %v1008
    %1012 = vrot.lane.b32.xlu0 %v987, 64
    %v1013 = vpop.permute.xlu0 %1012
    %v1015 = vsel %vm219, %v1013, 0
    %1017 = vmatprep.subr.bf16.mxu0 0
    %1018 = vmatpush1.bf16.msra.mxu0 %v920
    %1019 = vmatprep.subr.bf16.mxu0 0
    %1020 = vmatpush1.bf16.msra.mxu0 %v921
    %1021 = vmatprep.subr.bf16.mxu0 0
    %1022 = vmatpush1.bf16.msra.mxu0 0
    %1023 = vmatprep.subr.bf16.mxu0 0
    %1024 = vmatpush1.bf16.msra.mxu0 0
    %1025 = vmatprep.subr.bf16.mxu0 0
    %1026 = vmatpush1.bf16.msra.mxu0 0
    %1027 = vmatprep.subr.bf16.mxu0 0
    %1028 = vmatpush1.bf16.msra.mxu0 0
    %1029 = vmatprep.subr.bf16.mxu0 0
    %1030 = vmatpush1.bf16.msra.mxu0 0
    %1031 = vmatprep.subr.bf16.mxu0 0
    %1032 = vmatpush1.bf16.msra.mxu0 0
    %1033 = vmatprep.subr.bf16.mxu0 0
    %1034 = vmatpush1.bf16.msra.mxu0 0
    %1035 = vmatprep.subr.bf16.mxu0 0
    %1036 = vmatpush1.bf16.msra.mxu0 0
    %1037 = vmatprep.subr.bf16.mxu0 0
    %1038 = vmatpush1.bf16.msra.mxu0 0
    %1039 = vmatprep.subr.bf16.mxu0 0
    %1040 = vmatpush1.bf16.msra.mxu0 0
    %1041 = vmatprep.subr.bf16.mxu0 0
    %1042 = vmatpush1.bf16.msra.mxu0 0
    %1043 = vmatprep.subr.bf16.mxu0 0
    %1044 = vmatpush1.bf16.msra.mxu0 0
    %1045 = vmatprep.subr.bf16.mxu0 0
    %1046 = vmatpush1.bf16.msra.mxu0 0
    %1047 = vmatprep.subr.bf16.mxu0 0
    %1048 = vmatpush1.bf16.msra.mxu0 0
    %1049 = vmatprep.mubr.bf16.mxu0 0
    %1050 = vmatmul.mubr.bf16.gmra.mrb[0].mxu0 %v1015
    %v1051 = vpop.f32.mrb[0].mxu0
    %v1052 = vadd.f32 0.0, %v1051
    %v1053 = vpop.f32.mrb[0].mxu0
    %v1054 = vpop.f32.mrb[0].mxu0
    %v1055 = vpop.f32.mrb[0].mxu0
    %1056 = vdwg.mxu0
    %v1057 = vadd.f32 %v879, %v1052
    %v1058 = vmul.f32 %v1057, 0.5
    %v1059 = vtanh.pop %v1058
    %v1060 = vadd.f32 %v1059, 1.0
    %v1061 = vmul.f32 %v1060, 0.5
    %v1062 = vtanh.pop %v1057
    %v1063 = vmul.f32 %v1061, %v980
    %1065 = vrot.lane.b32.xlu0 %v1062, 32
    %v1066 = vpop.permute.xlu0 %1065
    %v1068 = vmul.f32 %v1061, %v1066
    %1070 = vrot.lane.b32.xlu0 %v1068, 32
    %v1071 = vpop.permute.xlu0 %1070
    %v1073 = vadd.f32 %v1063, %v1071
    %v1074 = vtanh.pop %v1073
    %1076 = vrot.lane.b32.xlu0 %v1074, 32
    %v1077 = vpop.permute.xlu0 %1076
    %v1079 = vmul.f32 %v1061, %v1077
    %v1080 = vpack.c.bf16 %v1079, %v1079
    %v1081 = vmul.f32 %v1079, %v994
    %1083 = vrot.lane.b32.xlu0 %v1081, 64
    %v1084 = vpop.permute.xlu0 %1083
    %v1086 = vsel %vm219, %v1084, 0.0
    %1087 = vadd.xlane.f32.xlu0 %v1086
    %v1088 = vpop.xlane.xlu0 %1087
    %v1089 = vadd.f32 %v1088, %v1008
    %v1090 = vmax.f32 %v1010, %v1089
    %v1091 = vsub.f32 %v1010, %v1090
    %v1092 = vmul.f32 %v1091, 1.442695
    %v1093 = vpow.pop %v1092
    %v1094 = vsub.f32 %v1089, %v1090
    %v1095 = vmul.f32 %v1094, 1.442695
    %v1096 = vpow.pop %v1095
    %v1097 = vadd.f32 %v1093, %v1096
    %1099 = vset.pattern.permute.xlu0 0
    %1100 = vperm.xlu0 %1099, %v1093
    %v1101 = vpop.permute.xlu0 %1100
    %v1103 = vmul.f32 %v1101, %v986
    %1105 = vset.pattern.permute.xlu0 0
    %1106 = vperm.xlu0 %1105, %v1096
    %v1107 = vpop.permute.xlu0 %1106
    %v1109 = vmul.f32 %v1107, %v1079
    %v1110 = vadd.f32 %v1103, %v1109
    %1112 = vrot.lane.b32.xlu0 %v1080, 64
    %v1113 = vpop.permute.xlu0 %1112
    %v1115 = vsel %vm219, %v1113, 0
    %1117 = vmatprep.subr.bf16.mxu0 0
    %1118 = vmatpush1.bf16.msra.mxu0 %v920
    %1119 = vmatprep.subr.bf16.mxu0 0
    %1120 = vmatpush1.bf16.msra.mxu0 %v921
    %1121 = vmatprep.subr.bf16.mxu0 0
    %1122 = vmatpush1.bf16.msra.mxu0 0
    %1123 = vmatprep.subr.bf16.mxu0 0
    %1124 = vmatpush1.bf16.msra.mxu0 0
    %1125 = vmatprep.subr.bf16.mxu0 0
    %1126 = vmatpush1.bf16.msra.mxu0 0
    %1127 = vmatprep.subr.bf16.mxu0 0
    %1128 = vmatpush1.bf16.msra.mxu0 0
    %1129 = vmatprep.subr.bf16.mxu0 0
    %1130 = vmatpush1.bf16.msra.mxu0 0
    %1131 = vmatprep.subr.bf16.mxu0 0
    %1132 = vmatpush1.bf16.msra.mxu0 0
    %1133 = vmatprep.subr.bf16.mxu0 0
    %1134 = vmatpush1.bf16.msra.mxu0 0
    %1135 = vmatprep.subr.bf16.mxu0 0
    %1136 = vmatpush1.bf16.msra.mxu0 0
    %1137 = vmatprep.subr.bf16.mxu0 0
    %1138 = vmatpush1.bf16.msra.mxu0 0
    %1139 = vmatprep.subr.bf16.mxu0 0
    %1140 = vmatpush1.bf16.msra.mxu0 0
    %1141 = vmatprep.subr.bf16.mxu0 0
    %1142 = vmatpush1.bf16.msra.mxu0 0
    %1143 = vmatprep.subr.bf16.mxu0 0
    %1144 = vmatpush1.bf16.msra.mxu0 0
    %1145 = vmatprep.subr.bf16.mxu0 0
    %1146 = vmatpush1.bf16.msra.mxu0 0
    %1147 = vmatprep.subr.bf16.mxu0 0
    %1148 = vmatpush1.bf16.msra.mxu0 0
    %1149 = vmatprep.mubr.bf16.mxu0 0
    %1150 = vmatmul.mubr.bf16.gmra.mrb[0].mxu0 %v1115
    %v1151 = vpop.f32.mrb[0].mxu0
    %v1152 = vadd.f32 0.0, %v1151
    %v1153 = vpop.f32.mrb[0].mxu0
    %v1154 = vpop.f32.mrb[0].mxu0
    %v1155 = vpop.f32.mrb[0].mxu0
    %1156 = vdwg.mxu0
    %v1157 = vadd.f32 %v884, %v1152
    %v1158 = vmul.f32 %v1157, 0.5
    %v1159 = vtanh.pop %v1158
    %v1160 = vadd.f32 %v1159, 1.0
    %v1161 = vmul.f32 %v1160, 0.5
    %v1162 = vtanh.pop %v1157
    %v1163 = vmul.f32 %v1161, %v1073
    %1165 = vrot.lane.b32.xlu0 %v1162, 32
    %v1166 = vpop.permute.xlu0 %1165
    %v1168 = vmul.f32 %v1161, %v1166
    %1170 = vrot.lane.b32.xlu0 %v1168, 32
    %v1171 = vpop.permute.xlu0 %1170
    %v1173 = vadd.f32 %v1163, %v1171
    %v1174 = vtanh.pop %v1173
    %1176 = vrot.lane.b32.xlu0 %v1174, 32
    %v1177 = vpop.permute.xlu0 %1176
    %v1179 = vmul.f32 %v1161, %v1177
    %v1180 = vpack.c.bf16 %v1179, %v1179
    %v1181 = vmul.f32 %v1179, %v994
    %1183 = vrot.lane.b32.xlu0 %v1181, 64
    %v1184 = vpop.permute.xlu0 %1183
    %v1186 = vsel %vm219, %v1184, 0.0
    %1187 = vadd.xlane.f32.xlu0 %v1186
    %v1188 = vpop.xlane.xlu0 %1187
    %v1189 = vadd.f32 %v1188, %v1008
    %v1190 = vmax.f32 %v1090, %v1189
    %v1191 = vsub.f32 %v1090, %v1190
    %v1192 = vmul.f32 %v1191, 1.442695
    %v1193 = vpow.pop %v1192
    %v1194 = vsub.f32 %v1189, %v1190
    %v1195 = vmul.f32 %v1194, 1.442695
    %v1196 = vpow.pop %v1195
    %v1197 = vmul.f32 %v1193, %v1097
    %v1198 = vadd.f32 %v1197, %v1196
    %1200 = vset.pattern.permute.xlu0 0
    %1201 = vperm.xlu0 %1200, %v1193
    %v1202 = vpop.permute.xlu0 %1201
    %v1204 = vmul.f32 %v1202, %v1110
    %1206 = vset.pattern.permute.xlu0 0
    %1207 = vperm.xlu0 %1206, %v1196
    %v1208 = vpop.permute.xlu0 %1207
    %v1210 = vmul.f32 %v1208, %v1179
    %v1211 = vadd.f32 %v1204, %v1210
    %1213 = vrot.lane.b32.xlu0 %v1180, 64
    %v1214 = vpop.permute.xlu0 %1213
    %v1216 = vsel %vm219, %v1214, 0
    %1218 = vmatprep.subr.bf16.mxu0 0
    %1219 = vmatpush1.bf16.msra.mxu0 %v920
    %1220 = vmatprep.subr.bf16.mxu0 0
    %1221 = vmatpush1.bf16.msra.mxu0 %v921
    %1222 = vmatprep.subr.bf16.mxu0 0
    %1223 = vmatpush1.bf16.msra.mxu0 0
    %1224 = vmatprep.subr.bf16.mxu0 0
    %1225 = vmatpush1.bf16.msra.mxu0 0
    %1226 = vmatprep.subr.bf16.mxu0 0
    %1227 = vmatpush1.bf16.msra.mxu0 0
    %1228 = vmatprep.subr.bf16.mxu0 0
    %1229 = vmatpush1.bf16.msra.mxu0 0
    %1230 = vmatprep.subr.bf16.mxu0 0
    %1231 = vmatpush1.bf16.msra.mxu0 0
    %1232 = vmatprep.subr.bf16.mxu0 0
    %1233 = vmatpush1.bf16.msra.mxu0 0
    %1234 = vmatprep.subr.bf16.mxu0 0
    %1235 = vmatpush1.bf16.msra.mxu0 0
    %1236 = vmatprep.subr.bf16.mxu0 0
    %1237 = vmatpush1.bf16.msra.mxu0 0
    %1238 = vmatprep.subr.bf16.mxu0 0
    %1239 = vmatpush1.bf16.msra.mxu0 0
    %1240 = vmatprep.subr.bf16.mxu0 0
    %1241 = vmatpush1.bf16.msra.mxu0 0
    %1242 = vmatprep.subr.bf16.mxu0 0
    %1243 = vmatpush1.bf16.msra.mxu0 0
    %1244 = vmatprep.subr.bf16.mxu0 0
    %1245 = vmatpush1.bf16.msra.mxu0 0
    %1246 = vmatprep.subr.bf16.mxu0 0
    %1247 = vmatpush1.bf16.msra.mxu0 0
    %1248 = vmatprep.subr.bf16.mxu0 0
    %1249 = vmatpush1.bf16.msra.mxu0 0
    %1250 = vmatprep.mubr.bf16.mxu0 0
    %1251 = vmatmul.mubr.bf16.gmra.mrb[0].mxu0 %v1216
    %v1252 = vpop.f32.mrb[0].mxu0
    %v1253 = vadd.f32 0.0, %v1252
    %v1254 = vpop.f32.mrb[0].mxu0
    %v1255 = vpop.f32.mrb[0].mxu0
    %v1256 = vpop.f32.mrb[0].mxu0
    %1257 = vdwg.mxu0
    %v1258 = vadd.f32 %v887, %v1253
    %v1259 = vmul.f32 %v1258, 0.5
    %v1260 = vtanh.pop %v1259
    %v1261 = vadd.f32 %v1260, 1.0
    %v1262 = vmul.f32 %v1261, 0.5
    %v1263 = vtanh.pop %v1258
    %v1264 = vmul.f32 %v1262, %v1173
    %1266 = vrot.lane.b32.xlu0 %v1263, 32
    %v1267 = vpop.permute.xlu0 %1266
    %v1269 = vmul.f32 %v1262, %v1267
    %1271 = vrot.lane.b32.xlu0 %v1269, 32
    %v1272 = vpop.permute.xlu0 %1271
    %v1274 = vadd.f32 %v1264, %v1272
    %v1275 = vtanh.pop %v1274
    %1277 = vrot.lane.b32.xlu0 %v1275, 32
    %v1278 = vpop.permute.xlu0 %1277
    %v1280 = vmul.f32 %v1262, %v1278
    %v1281 = vpack.c.bf16 %v1280, %v1280
    %v1282 = vmul.f32 %v1280, %v994
    %1284 = vrot.lane.b32.xlu0 %v1282, 64
    %v1285 = vpop.permute.xlu0 %1284
    %v1287 = vsel %vm219, %v1285, 0.0
    %1288 = vadd.xlane.f32.xlu0 %v1287
    %v1289 = vpop.xlane.xlu0 %1288
    %v1290 = vadd.f32 %v1289, %v1008
    %v1291 = vmax.f32 %v1190, %v1290
    %v1292 = vsub.f32 %v1190, %v1291
    %v1293 = vmul.f32 %v1292, 1.442695
    %v1294 = vpow.pop %v1293
    %v1295 = vsub.f32 %v1290, %v1291
    %v1296 = vmul.f32 %v1295, 1.442695
    %v1297 = vpow.pop %v1296
    %v1298 = vmul.f32 %v1294, %v1198
    %v1299 = vadd.f32 %v1298, %v1297
    %1301 = vset.pattern.permute.xlu0 0
    %1302 = vperm.xlu0 %1301, %v1294
    %v1303 = vpop.permute.xlu0 %1302
    %v1305 = vmul.f32 %v1303, %v1211
    %1307 = vset.pattern.permute.xlu0 0
    %1308 = vperm.xlu0 %1307, %v1297
    %v1309 = vpop.permute.xlu0 %1308
    %v1311 = vmul.f32 %v1309, %v1280
    %v1312 = vadd.f32 %v1305, %v1311
    %1314 = vrot.lane.b32.xlu0 %v1281, 64
    %v1315 = vpop.permute.xlu0 %1314
    %v1317 = vsel %vm219, %v1315, 0
    %1319 = vmatprep.subr.bf16.mxu0 0
    %1320 = vmatpush1.bf16.msra.mxu0 %v920
    %1321 = vmatprep.subr.bf16.mxu0 0
    %1322 = vmatpush1.bf16.msra.mxu0 %v921
    %1323 = vmatprep.subr.bf16.mxu0 0
    %1324 = vmatpush1.bf16.msra.mxu0 0
    %1325 = vmatprep.subr.bf16.mxu0 0
    %1326 = vmatpush1.bf16.msra.mxu0 0
    %1327 = vmatprep.subr.bf16.mxu0 0
    %1328 = vmatpush1.bf16.msra.mxu0 0
    %1329 = vmatprep.subr.bf16.mxu0 0
    %1330 = vmatpush1.bf16.msra.mxu0 0
    %1331 = vmatprep.subr.bf16.mxu0 0
    %1332 = vmatpush1.bf16.msra.mxu0 0
    %1333 = vmatprep.subr.bf16.mxu0 0
    %1334 = vmatpush1.bf16.msra.mxu0 0
    %1335 = vmatprep.subr.bf16.mxu0 0
    %1336 = vmatpush1.bf16.msra.mxu0 0
    %1337 = vmatprep.subr.bf16.mxu0 0
    %1338 = vmatpush1.bf16.msra.mxu0 0
    %1339 = vmatprep.subr.bf16.mxu0 0
    %1340 = vmatpush1.bf16.msra.mxu0 0
    %1341 = vmatprep.subr.bf16.mxu0 0
    %1342 = vmatpush1.bf16.msra.mxu0 0
    %1343 = vmatprep.subr.bf16.mxu0 0
    %1344 = vmatpush1.bf16.msra.mxu0 0
    %1345 = vmatprep.subr.bf16.mxu0 0
    %1346 = vmatpush1.bf16.msra.mxu0 0
    %1347 = vmatprep.subr.bf16.mxu0 0
    %1348 = vmatpush1.bf16.msra.mxu0 0
    %1349 = vmatprep.subr.bf16.mxu0 0
    %1350 = vmatpush1.bf16.msra.mxu0 0
    %1351 = vmatprep.mubr.bf16.mxu0 0
    %1352 = vmatmul.mubr.bf16.gmra.mrb[0].mxu0 %v1317
    %v1353 = vpop.f32.mrb[0].mxu0
    %v1354 = vadd.f32 0.0, %v1353
    %v1355 = vpop.f32.mrb[0].mxu0
    %v1356 = vpop.f32.mrb[0].mxu0
    %v1357 = vpop.f32.mrb[0].mxu0
    %1358 = vdwg.mxu0
    %v1359 = vadd.f32 %v892, %v1354
    %v1360 = vmul.f32 %v1359, 0.5
    %v1361 = vtanh.pop %v1360
    %v1362 = vadd.f32 %v1361, 1.0
    %v1363 = vmul.f32 %v1362, 0.5
    %v1364 = vtanh.pop %v1359
    %v1365 = vmul.f32 %v1363, %v1274
    %1367 = vrot.lane.b32.xlu0 %v1364, 32
    %v1368 = vpop.permute.xlu0 %1367
    %v1370 = vmul.f32 %v1363, %v1368
    %1372 = vrot.lane.b32.xlu0 %v1370, 32
    %v1373 = vpop.permute.xlu0 %1372
    %v1375 = vadd.f32 %v1365, %v1373
    %v1376 = vtanh.pop %v1375
    %1378 = vrot.lane.b32.xlu0 %v1376, 32
    %v1379 = vpop.permute.xlu0 %1378
    %v1381 = vmul.f32 %v1363, %v1379
    %v1382 = vpack.c.bf16 %v1381, %v1381
    %v1383 = vmul.f32 %v1381, %v994
    %1385 = vrot.lane.b32.xlu0 %v1383, 64
    %v1386 = vpop.permute.xlu0 %1385
    %v1388 = vsel %vm219, %v1386, 0.0
    %1389 = vadd.xlane.f32.xlu0 %v1388
    %v1390 = vpop.xlane.xlu0 %1389
    %v1391 = vadd.f32 %v1390, %v1008
    %v1392 = vmax.f32 %v1291, %v1391
    %v1393 = vsub.f32 %v1291, %v1392
    %v1394 = vmul.f32 %v1393, 1.442695
    %v1395 = vpow.pop %v1394
    %v1396 = vsub.f32 %v1391, %v1392
    %v1397 = vmul.f32 %v1396, 1.442695
    %v1398 = vpow.pop %v1397
    %v1399 = vmul.f32 %v1395, %v1299
    %v1400 = vadd.f32 %v1399, %v1398
    %1402 = vset.pattern.permute.xlu0 0
    %1403 = vperm.xlu0 %1402, %v1395
    %v1404 = vpop.permute.xlu0 %1403
    %v1406 = vmul.f32 %v1404, %v1312
    %1408 = vset.pattern.permute.xlu0 0
    %1409 = vperm.xlu0 %1408, %v1398
    %v1410 = vpop.permute.xlu0 %1409
    %v1412 = vmul.f32 %v1410, %v1381
    %v1413 = vadd.f32 %v1406, %v1412
    %1415 = vrot.lane.b32.xlu0 %v1382, 64
    %v1416 = vpop.permute.xlu0 %1415
    %v1418 = vsel %vm219, %v1416, 0
    %1420 = vmatprep.subr.bf16.mxu0 0
    %1421 = vmatpush1.bf16.msra.mxu0 %v920
    %1422 = vmatprep.subr.bf16.mxu0 0
    %1423 = vmatpush1.bf16.msra.mxu0 %v921
    %1424 = vmatprep.subr.bf16.mxu0 0
    %1425 = vmatpush1.bf16.msra.mxu0 0
    %1426 = vmatprep.subr.bf16.mxu0 0
    %1427 = vmatpush1.bf16.msra.mxu0 0
    %1428 = vmatprep.subr.bf16.mxu0 0
    %1429 = vmatpush1.bf16.msra.mxu0 0
    %1430 = vmatprep.subr.bf16.mxu0 0
    %1431 = vmatpush1.bf16.msra.mxu0 0
    %1432 = vmatprep.subr.bf16.mxu0 0
    %1433 = vmatpush1.bf16.msra.mxu0 0
    %1434 = vmatprep.subr.bf16.mxu0 0
    %1435 = vmatpush1.bf16.msra.mxu0 0
    %1436 = vmatprep.subr.bf16.mxu0 0
    %1437 = vmatpush1.bf16.msra.mxu0 0
    %1438 = vmatprep.subr.bf16.mxu0 0
    %1439 = vmatpush1.bf16.msra.mxu0 0
    %1440 = vmatprep.subr.bf16.mxu0 0
    %1441 = vmatpush1.bf16.msra.mxu0 0
    %1442 = vmatprep.subr.bf16.mxu0 0
    %1443 = vmatpush1.bf16.msra.mxu0 0
    %1444 = vmatprep.subr.bf16.mxu0 0
    %1445 = vmatpush1.bf16.msra.mxu0 0
    %1446 = vmatprep.subr.bf16.mxu0 0
    %1447 = vmatpush1.bf16.msra.mxu0 0
    %1448 = vmatprep.subr.bf16.mxu0 0
    %1449 = vmatpush1.bf16.msra.mxu0 0
    %1450 = vmatprep.subr.bf16.mxu0 0
    %1451 = vmatpush1.bf16.msra.mxu0 0
    %1452 = vmatprep.mubr.bf16.mxu0 0
    %1453 = vmatmul.mubr.bf16.gmra.mrb[0].mxu0 %v1418
    %v1454 = vpop.f32.mrb[0].mxu0
    %v1455 = vadd.f32 0.0, %v1454
    %v1456 = vpop.f32.mrb[0].mxu0
    %v1457 = vpop.f32.mrb[0].mxu0
    %v1458 = vpop.f32.mrb[0].mxu0
    %1459 = vdwg.mxu0
    %v1460 = vadd.f32 %v895, %v1455
    %v1461 = vmul.f32 %v1460, 0.5
    %v1462 = vtanh.pop %v1461
    %v1463 = vadd.f32 %v1462, 1.0
    %v1464 = vmul.f32 %v1463, 0.5
    %v1465 = vtanh.pop %v1460
    %v1466 = vmul.f32 %v1464, %v1375
    %1468 = vrot.lane.b32.xlu0 %v1465, 32
    %v1469 = vpop.permute.xlu0 %1468
    %v1471 = vmul.f32 %v1464, %v1469
    %1473 = vrot.lane.b32.xlu0 %v1471, 32
    %v1474 = vpop.permute.xlu0 %1473
    %v1476 = vadd.f32 %v1466, %v1474
    %v1477 = vtanh.pop %v1476
    %1479 = vrot.lane.b32.xlu0 %v1477, 32
    %v1480 = vpop.permute.xlu0 %1479
    %v1482 = vmul.f32 %v1464, %v1480
    %v1483 = vpack.c.bf16 %v1482, %v1482
    %v1484 = vmul.f32 %v1482, %v994
    %1486 = vrot.lane.b32.xlu0 %v1484, 64
    %v1487 = vpop.permute.xlu0 %1486
    %v1489 = vsel %vm219, %v1487, 0.0
    %1490 = vadd.xlane.f32.xlu0 %v1489
    %v1491 = vpop.xlane.xlu0 %1490
    %v1492 = vadd.f32 %v1491, %v1008
    %v1493 = vmax.f32 %v1392, %v1492
    %v1494 = vsub.f32 %v1392, %v1493
    %v1495 = vmul.f32 %v1494, 1.442695
    %v1496 = vpow.pop %v1495
    %v1497 = vsub.f32 %v1492, %v1493
    %v1498 = vmul.f32 %v1497, 1.442695
    %v1499 = vpow.pop %v1498
    %v1500 = vmul.f32 %v1496, %v1400
    %v1501 = vadd.f32 %v1500, %v1499
    %1503 = vset.pattern.permute.xlu0 0
    %1504 = vperm.xlu0 %1503, %v1496
    %v1505 = vpop.permute.xlu0 %1504
    %v1507 = vmul.f32 %v1505, %v1413
    %1509 = vset.pattern.permute.xlu0 0
    %1510 = vperm.xlu0 %1509, %v1499
    %v1511 = vpop.permute.xlu0 %1510
    %v1513 = vmul.f32 %v1511, %v1482
    %v1514 = vadd.f32 %v1507, %v1513
    %1516 = vrot.lane.b32.xlu0 %v1483, 64
    %v1517 = vpop.permute.xlu0 %1516
    %v1519 = vsel %vm219, %v1517, 0
    %1521 = vmatprep.subr.bf16.mxu0 0
    %1522 = vmatpush1.bf16.msra.mxu0 %v920
    %1523 = vmatprep.subr.bf16.mxu0 0
    %1524 = vmatpush1.bf16.msra.mxu0 %v921
    %1525 = vmatprep.subr.bf16.mxu0 0
    %1526 = vmatpush1.bf16.msra.mxu0 0
    %1527 = vmatprep.subr.bf16.mxu0 0
    %1528 = vmatpush1.bf16.msra.mxu0 0
    %1529 = vmatprep.subr.bf16.mxu0 0
    %1530 = vmatpush1.bf16.msra.mxu0 0
    %1531 = vmatprep.subr.bf16.mxu0 0
    %1532 = vmatpush1.bf16.msra.mxu0 0
    %1533 = vmatprep.subr.bf16.mxu0 0
    %1534 = vmatpush1.bf16.msra.mxu0 0
    %1535 = vmatprep.subr.bf16.mxu0 0
    %1536 = vmatpush1.bf16.msra.mxu0 0
    %1537 = vmatprep.subr.bf16.mxu0 0
    %1538 = vmatpush1.bf16.msra.mxu0 0
    %1539 = vmatprep.subr.bf16.mxu0 0
    %1540 = vmatpush1.bf16.msra.mxu0 0
    %1541 = vmatprep.subr.bf16.mxu0 0
    %1542 = vmatpush1.bf16.msra.mxu0 0
    %1543 = vmatprep.subr.bf16.mxu0 0
    %1544 = vmatpush1.bf16.msra.mxu0 0
    %1545 = vmatprep.subr.bf16.mxu0 0
    %1546 = vmatpush1.bf16.msra.mxu0 0
    %1547 = vmatprep.subr.bf16.mxu0 0
    %1548 = vmatpush1.bf16.msra.mxu0 0
    %1549 = vmatprep.subr.bf16.mxu0 0
    %1550 = vmatpush1.bf16.msra.mxu0 0
    %1551 = vmatprep.subr.bf16.mxu0 0
    %1552 = vmatpush1.bf16.msra.mxu0 0
    %1553 = vmatprep.mubr.bf16.mxu0 0
    %1554 = vmatmul.mubr.bf16.gmra.mrb[0].mxu0 %v1519
    %v1555 = vpop.f32.mrb[0].mxu0
    %v1556 = vadd.f32 0.0, %v1555
    %v1557 = vpop.f32.mrb[0].mxu0
    %v1558 = vpop.f32.mrb[0].mxu0
    %v1559 = vpop.f32.mrb[0].mxu0
    %1560 = vdwg.mxu0
    %v1561 = vadd.f32 %v900, %v1556
    %v1562 = vmul.f32 %v1561, 0.5
    %v1563 = vtanh.pop %v1562
    %v1564 = vadd.f32 %v1563, 1.0
    %v1565 = vmul.f32 %v1564, 0.5
    %v1566 = vtanh.pop %v1561
    %v1567 = vmul.f32 %v1565, %v1476
    %1569 = vrot.lane.b32.xlu0 %v1566, 32
    %v1570 = vpop.permute.xlu0 %1569
    %v1572 = vmul.f32 %v1565, %v1570
    %1574 = vrot.lane.b32.xlu0 %v1572, 32
    %v1575 = vpop.permute.xlu0 %1574
    %v1577 = vadd.f32 %v1567, %v1575
    %v1578 = vtanh.pop %v1577
    %1580 = vrot.lane.b32.xlu0 %v1578, 32
    %v1581 = vpop.permute.xlu0 %1580
    %v1583 = vmul.f32 %v1565, %v1581
    %v1584 = vpack.c.bf16 %v1583, %v1583
    %v1585 = vmul.f32 %v1583, %v994
    %1587 = vrot.lane.b32.xlu0 %v1585, 64
    %v1588 = vpop.permute.xlu0 %1587
    %v1590 = vsel %vm219, %v1588, 0.0
    %1591 = vadd.xlane.f32.xlu0 %v1590
    %v1592 = vpop.xlane.xlu0 %1591
    %v1593 = vadd.f32 %v1592, %v1008
    %v1594 = vmax.f32 %v1493, %v1593
    %v1595 = vsub.f32 %v1493, %v1594
    %v1596 = vmul.f32 %v1595, 1.442695
    %v1597 = vpow.pop %v1596
    %v1598 = vsub.f32 %v1593, %v1594
    %v1599 = vmul.f32 %v1598, 1.442695
    %v1600 = vpow.pop %v1599
    %v1601 = vmul.f32 %v1597, %v1501
    %v1602 = vadd.f32 %v1601, %v1600
    %1604 = vset.pattern.permute.xlu0 0
    %1605 = vperm.xlu0 %1604, %v1597
    %v1606 = vpop.permute.xlu0 %1605
    %v1608 = vmul.f32 %v1606, %v1514
    %1610 = vset.pattern.permute.xlu0 0
    %1611 = vperm.xlu0 %1610, %v1600
    %v1612 = vpop.permute.xlu0 %1611
    %v1614 = vmul.f32 %v1612, %v1583
    %v1615 = vadd.f32 %v1608, %v1614
    %1617 = vrot.lane.b32.xlu0 %v1584, 64
    %v1618 = vpop.permute.xlu0 %1617
    %v1620 = vsel %vm219, %v1618, 0
    %1622 = vmatprep.subr.bf16.mxu0 0
    %1623 = vmatpush1.bf16.msra.mxu0 %v920
    %1624 = vmatprep.subr.bf16.mxu0 0
    %1625 = vmatpush1.bf16.msra.mxu0 %v921
    %1626 = vmatprep.subr.bf16.mxu0 0
    %1627 = vmatpush1.bf16.msra.mxu0 0
    %1628 = vmatprep.subr.bf16.mxu0 0
    %1629 = vmatpush1.bf16.msra.mxu0 0
    %1630 = vmatprep.subr.bf16.mxu0 0
    %1631 = vmatpush1.bf16.msra.mxu0 0
    %1632 = vmatprep.subr.bf16.mxu0 0
    %1633 = vmatpush1.bf16.msra.mxu0 0
    %1634 = vmatprep.subr.bf16.mxu0 0
    %1635 = vmatpush1.bf16.msra.mxu0 0
    %1636 = vmatprep.subr.bf16.mxu0 0
    %1637 = vmatpush1.bf16.msra.mxu0 0
    %1638 = vmatprep.subr.bf16.mxu0 0
    %1639 = vmatpush1.bf16.msra.mxu0 0
    %1640 = vmatprep.subr.bf16.mxu0 0
    %1641 = vmatpush1.bf16.msra.mxu0 0
    %1642 = vmatprep.subr.bf16.mxu0 0
    %1643 = vmatpush1.bf16.msra.mxu0 0
    %1644 = vmatprep.subr.bf16.mxu0 0
    %1645 = vmatpush1.bf16.msra.mxu0 0
    %1646 = vmatprep.subr.bf16.mxu0 0
    %1647 = vmatpush1.bf16.msra.mxu0 0
    %1648 = vmatprep.subr.bf16.mxu0 0
    %1649 = vmatpush1.bf16.msra.mxu0 0
    %1650 = vmatprep.subr.bf16.mxu0 0
    %1651 = vmatpush1.bf16.msra.mxu0 0
    %1652 = vmatprep.subr.bf16.mxu0 0
    %1653 = vmatpush1.bf16.msra.mxu0 0
    %1654 = vmatprep.mubr.bf16.mxu0 0
    %1655 = vmatmul.mubr.bf16.gmra.mrb[0].mxu0 %v1620
    %v1656 = vpop.f32.mrb[0].mxu0
    %v1657 = vadd.f32 0.0, %v1656
    %v1658 = vpop.f32.mrb[0].mxu0
    %v1659 = vpop.f32.mrb[0].mxu0
    %v1660 = vpop.f32.mrb[0].mxu0
    %1661 = vdwg.mxu0
    %v1662 = vadd.f32 %v903, %v1657
    %v1663 = vmul.f32 %v1662, 0.5
    %v1664 = vtanh.pop %v1663
    %v1665 = vadd.f32 %v1664, 1.0
    %v1666 = vmul.f32 %v1665, 0.5
    %v1667 = vtanh.pop %v1662
    %v1668 = vmul.f32 %v1666, %v1577
    %1670 = vrot.lane.b32.xlu0 %v1667, 32
    %v1671 = vpop.permute.xlu0 %1670
    %v1673 = vmul.f32 %v1666, %v1671
    %1675 = vrot.lane.b32.xlu0 %v1673, 32
    %v1676 = vpop.permute.xlu0 %1675
    %v1678 = vadd.f32 %v1668, %v1676
    %v1679 = vtanh.pop %v1678
    %1681 = vrot.lane.b32.xlu0 %v1679, 32
    %v1682 = vpop.permute.xlu0 %1681
    %v1684 = vmul.f32 %v1666, %v1682
    %v1685 = vmul.f32 %v1684, %v994
    %1687 = vrot.lane.b32.xlu0 %v1685, 64
    %v1688 = vpop.permute.xlu0 %1687
    %v1690 = vsel %vm219, %v1688, 0.0
    %1691 = vadd.xlane.f32.xlu0 %v1690
    %v1692 = vpop.xlane.xlu0 %1691
    %v1693 = vadd.f32 %v1692, %v1008
    %v1694 = vmax.f32 %v1594, %v1693
    %v1695 = vsub.f32 %v1594, %v1694
    %v1696 = vmul.f32 %v1695, 1.442695
    %v1697 = vpow.pop %v1696
    %v1698 = vsub.f32 %v1693, %v1694
    %v1699 = vmul.f32 %v1698, 1.442695
    %v1700 = vpow.pop %v1699
    %v1701 = vmul.f32 %v1697, %v1602
    %v1702 = vadd.f32 %v1701, %v1700
    %1704 = vset.pattern.permute.xlu0 0
    %1705 = vperm.xlu0 %1704, %v1697
    %v1706 = vpop.permute.xlu0 %1705
    %v1708 = vmul.f32 %v1706, %v1615
    %1710 = vset.pattern.permute.xlu0 0
    %1711 = vperm.xlu0 %1710, %v1700
    %v1712 = vpop.permute.xlu0 %1711
    %v1714 = vmul.f32 %v1712, %v1684
    %v1715 = vadd.f32 %v1708, %v1714
    %v1716 = vrcp.pop %v1702
    %1718 = vset.pattern.permute.xlu0 0
    %1719 = vperm.xlu0 %1718, %v1716
    %v1720 = vpop.permute.xlu0 %1719
    %v1722 = vmul.f32 %v1715, %v1720
    %v1723 = vpack.c.bf16 %v1722, %v1722
    %v1724 = vld [vmem:[%s9] sm:$0xf]
    %v1725 = vld [vmem:[%s9 + $0x4] sm:$0xf]
    %v1726 = vld [vmem:[%s9 + $0x8] sm:$0xf]
    %v1727 = vld [vmem:[%s9 + $0xc] sm:$0xf]
    %v1728 = vld [vmem:[%s10] sm:$0x1]
    %v1730 = vlaneseq
    %v1731 = vshrl.u32 %v1730, 7
    %v1732 = vsub.s32 0, %v1731
    %v1733 = vrot.slane %v1728, %v1732
    %1736 = vrot.lane.b32.xlu0 %v1723, 64
    %v1737 = vpop.permute.xlu0 %1736
    %v1742 = vunpack.c.l.b16 %v1724
    %v1743 = vunpack.c.l.b16 %v1725
    %v1744 = vunpack.c.l.b16 %v1726
    %v1745 = vunpack.c.l.b16 %v1727
    %v1746 = vpack.c.b16 %v1743, %v1742
    %v1747 = vpack.c.b16 %v1745, %v1744
    %v1751 = vsel %vm219, %v1737, 0
    %1753 = vmatprep.subr.bf16.mxu0 0
    %1754 = vmatpush1.bf16.msra.mxu0 %v1746
    %1755 = vmatprep.subr.bf16.mxu0 0
    %1756 = vmatpush1.bf16.msra.mxu0 %v1747
    %1757 = vmatprep.subr.bf16.mxu0 0
    %1758 = vmatpush1.bf16.msra.mxu0 0
    %1759 = vmatprep.subr.bf16.mxu0 0
    %1760 = vmatpush1.bf16.msra.mxu0 0
    %1761 = vmatprep.subr.bf16.mxu0 0
    %1762 = vmatpush1.bf16.msra.mxu0 0
    %1763 = vmatprep.subr.bf16.mxu0 0
    %1764 = vmatpush1.bf16.msra.mxu0 0
    %1765 = vmatprep.subr.bf16.mxu0 0
    %1766 = vmatpush1.bf16.msra.mxu0 0
    %1767 = vmatprep.subr.bf16.mxu0 0
    %1768 = vmatpush1.bf16.msra.mxu0 0
    %1769 = vmatprep.subr.bf16.mxu0 0
    %1770 = vmatpush1.bf16.msra.mxu0 0
    %1771 = vmatprep.subr.bf16.mxu0 0
    %1772 = vmatpush1.bf16.msra.mxu0 0
    %1773 = vmatprep.subr.bf16.mxu0 0
    %1774 = vmatpush1.bf16.msra.mxu0 0
    %1775 = vmatprep.subr.bf16.mxu0 0
    %1776 = vmatpush1.bf16.msra.mxu0 0
    %1777 = vmatprep.subr.bf16.mxu0 0
    %1778 = vmatpush1.bf16.msra.mxu0 0
    %1779 = vmatprep.subr.bf16.mxu0 0
    %1780 = vmatpush1.bf16.msra.mxu0 0
    %1781 = vmatprep.subr.bf16.mxu0 0
    %1782 = vmatpush1.bf16.msra.mxu0 0
    %1783 = vmatprep.subr.bf16.mxu0 0
    %1784 = vmatpush1.bf16.msra.mxu0 0
    %1785 = vmatprep.mubr.bf16.mxu0 0
    %1786 = vmatmul.mubr.bf16.gmra.mrb[0].mxu0 %v1751
    %v1787 = vpop.f32.mrb[0].mxu0
    %v1788 = vadd.f32 %v1733, %v1787
    %v1789 = vpop.f32.mrb[0].mxu0
    %v1790 = vpop.f32.mrb[0].mxu0
    %v1791 = vpop.f32.mrb[0].mxu0
    %1792 = vdwg.mxu0
    %v1793 = vmax.f32 %v1788, 0.0
    %v1794 = vpack.c.bf16 %v1793, %v1793
    %v1795 = vld [vmem:[#allocation8] sm:$0xf]
    %v1796 = vld [vmem:[#allocation8 + $0x4] sm:$0xf]
    %v1797 = vld [vmem:[#allocation8 + $0x8] sm:$0xf]
    %v1798 = vld [vmem:[#allocation8 + $0xc] sm:$0xf]
    %v1799 = vld [vmem:[%s12] sm:$0x1]
    %v1801 = vlaneseq
    %v1802 = vshrl.u32 %v1801, 7
    %v1803 = vsub.s32 0, %v1802
    %v1804 = vrot.slane %v1799, %v1803
    %v1810 = vunpack.c.l.b16 %v1795
    %v1811 = vunpack.c.l.b16 %v1796
    %v1812 = vunpack.c.l.b16 %v1797
    %v1813 = vunpack.c.l.b16 %v1798
    %v1814 = vpack.c.b16 %v1811, %v1810
    %v1815 = vpack.c.b16 %v1813, %v1812
    %v1819 = vsel %vm219, %v1794, 0
    %1821 = vmatprep.subr.bf16.mxu0 0
    %1822 = vmatpush1.bf16.msra.mxu0 %v1814
    %1823 = vmatprep.subr.bf16.mxu0 0
    %1824 = vmatpush1.bf16.msra.mxu0 %v1815
    %1825 = vmatprep.subr.bf16.mxu0 0
    %1826 = vmatpush1.bf16.msra.mxu0 0
    %1827 = vmatprep.subr.bf16.mxu0 0
    %1828 = vmatpush1.bf16.msra.mxu0 0
    %1829 = vmatprep.subr.bf16.mxu0 0
    %1830 = vmatpush1.bf16.msra.mxu0 0
    %1831 = vmatprep.subr.bf16.mxu0 0
    %1832 = vmatpush1.bf16.msra.mxu0 0
    %1833 = vmatprep.subr.bf16.mxu0 0
    %1834 = vmatpush1.bf16.msra.mxu0 0
    %1835 = vmatprep.subr.bf16.mxu0 0
    %1836 = vmatpush1.bf16.msra.mxu0 0
    %1837 = vmatprep.subr.bf16.mxu0 0
    %1838 = vmatpush1.bf16.msra.mxu0 0
    %1839 = vmatprep.subr.bf16.mxu0 0
    %1840 = vmatpush1.bf16.msra.mxu0 0
    %1841 = vmatprep.subr.bf16.mxu0 0
    %1842 = vmatpush1.bf16.msra.mxu0 0
    %1843 = vmatprep.subr.bf16.mxu0 0
    %1844 = vmatpush1.bf16.msra.mxu0 0
    %1845 = vmatprep.subr.bf16.mxu0 0
    %1846 = vmatpush1.bf16.msra.mxu0 0
    %1847 = vmatprep.subr.bf16.mxu0 0
    %1848 = vmatpush1.bf16.msra.mxu0 0
    %1849 = vmatprep.subr.bf16.mxu0 0
    %1850 = vmatpush1.bf16.msra.mxu0 0
    %1851 = vmatprep.subr.bf16.mxu0 0
    %1852 = vmatpush1.bf16.msra.mxu0 0
    %1853 = vmatprep.mubr.bf16.mxu0 0
    %1854 = vmatmul.mubr.bf16.gmra.mrb[0].mxu0 %v1819
    %v1855 = vpop.f32.mrb[0].mxu0
    %v1856 = vadd.f32 %v1804, %v1855
    %v1857 = vpop.f32.mrb[0].mxu0
    %v1858 = vpop.f32.mrb[0].mxu0
    %v1859 = vpop.f32.mrb[0].mxu0
    %1860 = vdwg.mxu0
    %1861 = vst [vmem:[#allocation9] sm:$0xff] %v1856
    // Predicated region
    $region66: #{tpu_custom_call.1} parent=1 // pred_check
      _
    $region67: #{tpu_custom_call.1} parent=1 // pred_check_branch
      %1863 = sbr.rel (0) target = $region69
    $region68: #{tpu_custom_call.1} parent=1 // pred_region
      %s1865 = ssub.s32 128, 128
      %1866 = vsyncadd [#allocation5], %s1865
      %s1868 = sshll.u32 [#allocation9], 4
      %s1869 = int_to_ptr.vmem [resolvable:$true] %s1868
      %1871 = dma.vmem_to_hbm [thread:$0]  %s1869, 128, %s13, [#allocation5]
    $region69: #{tpu_custom_call.1} parent=1 // pred_fallthru
      _
    // Predicated region
    $region70: #{tpu_custom_call.1} parent=1 // pred_check
      _
    $region71: #{tpu_custom_call.1} parent=1 // pred_check_branch
      %1873 = sbr.rel (0) target = $region73
    $region72: #{tpu_custom_call.1} parent=1 // pred_region
      %1874 = dma.done [#allocation5], 128
    $region73: #{tpu_custom_call.1} parent=1 // pred_fallthru
      _
    %1875 = vsyncpa [#allocation4], 1
    %1876 = vsyncpa [#allocation7], 1
    %1877 = vsyncpa [#allocation5], 1

</llo_original>
